<compile_context>
chip_gen: v7x
topology: tpu7x:2x2x1
jax: 0.10.0
libtpu: 0.0.40
codegen_flags: <defaults>
</compile_context>

<pallas_src>
import functools

import jax
import jax.numpy as jnp
from jax import lax
from jax.experimental import pallas as pl
from jax.experimental.pallas import tpu as pltpu


def _vmem_limit_bytes():
    """Per-generation scoped-VMEM budget (leave headroom for compiler scratch)."""
    try:
        cap = int(pltpu.get_tpu_info().vmem_capacity_bytes)
    except Exception:
        cap = 128 * 1024 * 1024
    return int(min(max(cap - 8 * 1024 * 1024, 32 * 1024 * 1024),
                   100 * 1024 * 1024))


def _photo_loss_kernel(cand_ref, img_ref, out_ref,
                       min_ref, muy_ref, muy_sq_c1_ref, sigy_c2_ref, *,
                       ssim_w, C1, C2, H_valid, W_valid):
    """One grid step = (batch tile b, context candidate n).

    cand_ref      : (C, 1, Hp, Wp) candidate image block (channel-major)
    img_ref       : (C, 1, Hp, Wp) target image block (same block for all n)
    out_ref       : (1, 8, 128)    per-batch-tile partial sum (last n only)
    min_ref       : (1, Hp, Wp)    running per-pixel min over candidates
    muy_ref       : (C, 1, Hp, Wp) hoisted 9*mu_y
    muy_sq_c1_ref : (C, 1, Hp, Wp) hoisted 81*mu_y^2 + 81*C1
    sigy_c2_ref   : (C, 1, Hp, Wp) hoisted 81*(sigma_y + C2)
    """
    n = pl.program_id(1)
    C, _, Hp, Wp = cand_ref.shape

    C1_81 = 81.0 * C1
    C2_81 = 81.0 * C2

    # Constant reflection-correction maps: +1 at first row/col, -1 at last.
    ri = lax.broadcasted_iota(jnp.int32, (1, Hp, Wp), 1)
    ci = lax.broadcasted_iota(jnp.int32, (1, Hp, Wp), 2)
    e_row = (ri == 0).astype(jnp.float32) - (ri == Hp - 1).astype(jnp.float32)
    e_col = (ci == 0).astype(jnp.float32) - (ci == Wp - 1).astype(jnp.float32)

    # Separable reflect-padded 3x3 SUM (no 1/9); (H+2, W+2) never materialized.
    # Circular roll + additive edge correction:
    #   row 0     ->  + z[1]   - z[Hp-1]
    #   row Hp-1  ->  + z[Hp-2] - z[0]
    def sum3_rows(z):
        prev = pltpu.roll(z, 1, axis=1)        # prev[i] = z[i-1 mod Hp]
        nxt = pltpu.roll(z, Hp - 1, axis=1)    # nxt[i]  = z[i+1 mod Hp]
        return prev + z + nxt + (nxt - prev) * e_row

    def sum3_cols(z):
        prev = pltpu.roll(z, 1, axis=2)
        nxt = pltpu.roll(z, Wp - 1, axis=2)
        return prev + z + nxt + (nxt - prev) * e_col

    def sum3(z):
        return sum3_cols(sum3_rows(z))

    # ---- hoist target-only SSIM stats once per batch tile -------------------
    @pl.when(n == 0)
    def _():
        for c in range(C):
            y = img_ref[c].astype(jnp.float32)
            sy = sum3(y)                          # 9 * mu_y
            sy_sq = sy * sy                       # 81 * mu_y^2
            muy_ref[c] = sy
            muy_sq_c1_ref[c] = sy_sq + C1_81
            sigy_c2_ref[c] = 9.0 * sum3(y * y) - sy_sq + C2_81

    # ---- per-candidate photometric loss (channel loop keeps live set small) -
    l1_sum = jnp.zeros((1, Hp, Wp), jnp.float32)
    ssim_sum = jnp.zeros((1, Hp, Wp), jnp.float32)
    for c in range(C):
        x = cand_ref[c].astype(jnp.float32)
        y = img_ref[c].astype(jnp.float32)
        l1_sum = l1_sum + jnp.abs(x - y)

        sx = sum3(x)                              # 9 * mu_x
        sx_sq = sx * sx                           # 81 * mu_x^2
        mu_xy = sx * muy_ref[c]                   # 81 * mu_x*mu_y
        sigma_x = 9.0 * sum3(x * x) - sx_sq       # 81 * sigma_x
        sigma_xy = 9.0 * sum3(x * y) - mu_xy      # 81 * sigma_xy

        v1 = 2.0 * sigma_xy + C2_81               # 81 * (2 sigma_xy + C2)
        v2 = sigma_x + sigy_c2_ref[c]             # 81 * (sigma_x + sigma_y + C2)
        ssim_n = (2.0 * mu_xy + C1_81) * v1
        ssim_d = (sx_sq + muy_sq_c1_ref[c]) * v2
        # EUP approximate reciprocal; clamped right after, error negligible.
        ssim = ssim_n * pl.reciprocal(ssim_d, approx=True)
        ssim_sum = ssim_sum + jnp.clip((1.0 - ssim) * 0.5, 0.0, 1.0)

    # channel mean folded into the weights
    photo = (ssim_w / C) * ssim_sum + ((1.0 - ssim_w) / C) * l1_sum

    # ---- running per-pixel min over candidates ('min' reduce + automask) ----
    @pl.when(n == 0)
    def _():
        min_ref[...] = photo

    @pl.when(n > 0)
    def _():
        min_ref[...] = jnp.minimum(min_ref[...], photo)

    # ---- finalize: masked partial sum of the min map for this batch tile ----
    @pl.when(n == pl.num_programs(1) - 1)
    def _():
        m = min_ref[...]
        if H_valid < Hp or W_valid < Wp:
            valid = (ri < H_valid) & (ci < W_valid)
            m = jnp.where(valid, m, 0.0)
        out_ref[...] = jnp.full((1, 8, 128), jnp.sum(m), dtype=jnp.float32)


def _pad_to_tiles(x, Hp, Wp):
    """Pad trailing (H, W) dims up to (Hp, Wp).

    The FIRST padded column/row equals column W-2 / row H-2 (the reflection
    neighbour), so the separable reflect-pool on the last valid column/row is
    exactly the unpadded ReflectionPad2d(1)+AvgPool result.  Remaining padded
    columns/rows just replicate it (finite values; masked out of the mean).
    """
    H, W = x.shape[-2], x.shape[-1]
    if Wp > W:
        col = x[..., :, W - 2:W - 1]
        pad = jnp.broadcast_to(col, x.shape[:-1] + (Wp - W,))
        x = jnp.concatenate([x, pad], axis=-1)
    if Hp > H:
        row = x[..., H - 2:H - 1, :]
        pad = jnp.broadcast_to(row, x.shape[:-2] + (Hp - H, x.shape[-1]))
        x = jnp.concatenate([x, pad], axis=-2)
    return x


def _photometric_loss_one_scale(cands, image, *, ssim_w, C1, C2,
                                storage_dtype=jnp.bfloat16):
    """cands: (N, B, 3, H, W) candidates, image: (B, 3, H, W). Returns scalar."""
    N, B, C, H, W = cands.shape
    assert H >= 3 and W >= 3, "ReflectionPad2d(1) requires H, W >= 3"

    # Lane/sublane-aligned padded extents: every scale takes the roll path.
    Hp = ((H + 7) // 8) * 8
    Wp = ((W + 127) // 128) * 128

    cands_p = _pad_to_tiles(cands, Hp, Wp)
    image_p = _pad_to_tiles(image, Hp, Wp)

    # channel-major layout: each channel is a contiguous leading-dim slice.
    cands_cm = jnp.transpose(cands_p, (0, 2, 1, 3, 4)).reshape(N * C, B, Hp, Wp)
    image_cm = jnp.transpose(image_p, (1, 0, 2, 3))
    cands_cm = cands_cm.astype(storage_dtype)   # halve HBM->VMEM bytes
    image_cm = image_cm.astype(storage_dtype)

    kernel = functools.partial(_photo_loss_kernel, ssim_w=ssim_w, C1=C1, C2=C2,
                               H_valid=H, W_valid=W)

    out = pl.pallas_call(
        kernel,
        out_shape=jax.ShapeDtypeStruct((B, 8, 128), jnp.float32),
        grid_spec=pltpu.PrefetchScalarGridSpec(
            num_scalar_prefetch=0,
            grid=(B, N),                              # candidates innermost
            in_specs=[
                # candidate n, batch tile b -> channel rows [n*C, (n+1)*C)
                pl.BlockSpec((C, 1, Hp, Wp), lambda b, n: (n, b, 0, 0)),
                # target image: same block for every candidate (no re-DMA over n)
                pl.BlockSpec((C, 1, Hp, Wp), lambda b, n: (0, b, 0, 0)),
            ],
            # lane-dense per-batch-tile partial sums; reduced in JAX afterwards
            out_specs=pl.BlockSpec((1, 8, 128), lambda b, n: (b, 0, 0)),
            scratch_shapes=[
                pltpu.VMEM((1, Hp, Wp), jnp.float32),      # running min map
                pltpu.VMEM((C, 1, Hp, Wp), jnp.float32),   # 9*mu_y
                pltpu.VMEM((C, 1, Hp, Wp), jnp.float32),   # 81*mu_y^2 + 81*C1
                pltpu.VMEM((C, 1, Hp, Wp), jnp.float32),   # 81*(sigma_y + C2)
            ],
        ),
        compiler_params=pltpu.CompilerParams(
            dimension_semantics=("parallel", "arbitrary"),
            vmem_limit_bytes=_vmem_limit_bytes(),
        ),
    )(cands_cm, image_cm)

    # mean over the B*H*W VALID pixels (padding excluded in-kernel)
    return jnp.sum(out[:, 0, 0]) / float(B * H * W)


def multi_view_photometric_loss(images, warped_refs, unwarped_refs, *,
                                ssim_w=0.85, C1=1e-4, C2=9e-4,
                                automask=True, storage_dtype=jnp.bfloat16):
    """Mirrors MultiViewPhotometricLoss.forward (min-reduce + automask).

    images        : list over scales of (B, 3, H_s, W_s) target images
    warped_refs   : list over context frames -> list over scales (warped refs)
    unwarped_refs : same structure (unwarped refs matched to each scale)
    """
    num_scales = len(images)
    total = jnp.float32(0.0)
    for s in range(num_scales):
        cands = []
        for f in range(len(warped_refs)):
            cands.append(warped_refs[f][s])
            if automask:
                cands.append(unwarped_refs[f][s])
        cands = jnp.stack(cands, axis=0)  # (N, B, 3, H_s, W_s)
        total = total + _photometric_loss_one_scale(
            cands, images[s], ssim_w=ssim_w, C1=C1, C2=C2,
            storage_dtype=storage_dtype)
    return total / num_scales


if __name__ == "__main__":
    key = jax.random.PRNGKey(0)
    # scale 0 (16x128) is already lane/sublane aligned; scale 1 (8x64) exercises
    # the W-padding (+ masked mean) path.
    B, C, H, W = 2, 3, 16, 128
    scales = [0, 1]
    temp_context = [0, -1, 1]      # frame 0 = target, two context frames
    n_ctx = len(temp_context) - 1

    def downsample(img, s):
        # nearest-neighbour downsample (stand-in for match_scales glue)
        return img[..., ::2 ** s, ::2 ** s]

    k1, k2, k3 = jax.random.split(key, 3)
    target = jax.random.uniform(k1, (B, C, H, W), jnp.float32)
    ref_full = jax.random.uniform(k2, (n_ctx, B, C, H, W), jnp.float32)
    # synthetic "warped" reference images (see TODO(synk) about Warping)
    warped_full = jax.random.uniform(k3, (n_ctx, B, C, H, W), jnp.float32)

    images = [downsample(target, s) for s in scales]
    warped_refs = [[downsample(warped_full[f], s) for s in scales]
                   for f in range(n_ctx)]
    unwarped_refs = [[downsample(ref_full[f], s) for s in scales]
                     for f in range(n_ctx)]

    loss = multi_view_photometric_loss(images, warped_refs, unwarped_refs)
    loss = jax.block_until_ready(loss)
    print("KERNEL_OK")
</pallas_src>

<mosaic_0001>
module attributes {stable_mosaic.version = 11 : i64} {
  func.func @_photo_loss_kernel(%arg0: i32, %arg1: i32, %arg2: memref<3x1x16x128xbf16, #tpu.memory_space<vmem>>, %arg3: memref<3x1x16x128xbf16, #tpu.memory_space<vmem>>, %arg4: memref<1x8x128xf32, #tpu.memory_space<vmem>>, %arg5: memref<1x16x128xf32, #tpu.memory_space<vmem>>, %arg6: memref<3x1x16x128xf32, #tpu.memory_space<vmem>>, %arg7: memref<3x1x16x128xf32, #tpu.memory_space<vmem>>, %arg8: memref<3x1x16x128xf32, #tpu.memory_space<vmem>>) attributes {dimension_semantics = [#tpu.dimension_semantics<parallel>, #tpu.dimension_semantics<arbitrary>], iteration_bounds = array<i64: 2, 4>, scalar_prefetch = 0 : i64, scratch_operands = 4 : i64, tpu.core_type = #tpu.core_type<tc>, window_params = [{transform_indices = @transform_0, window_bounds = array<i64: 3, 1, 16, 128>}, {transform_indices = @transform_1, window_bounds = array<i64: 3, 1, 16, 128>}, {transform_indices = @transform_2, window_bounds = array<i64: 1, 8, 128>}]} {
    %0 = tpu.iota {dimensions = array<i32: 1>} : vector<1x16x128xi32>
    %1 = tpu.iota {dimensions = array<i32: 2>} : vector<1x16x128xi32>
    %c0_i32 = arith.constant 0 : i32
    %2 = vector.broadcast %c0_i32 : i32 to vector<1x16x128xi32>
    %3 = arith.cmpi eq, %0, %2 : vector<1x16x128xi32>
    %4 = arith.extui %3 : vector<1x16x128xi1> to vector<1x16x128xi32>
    %5 = arith.sitofp %4 : vector<1x16x128xi32> to vector<1x16x128xf32>
    %c15_i32 = arith.constant 15 : i32
    %6 = vector.broadcast %c15_i32 : i32 to vector<1x16x128xi32>
    %7 = arith.cmpi eq, %0, %6 : vector<1x16x128xi32>
    %8 = arith.extui %7 : vector<1x16x128xi1> to vector<1x16x128xi32>
    %9 = arith.sitofp %8 : vector<1x16x128xi32> to vector<1x16x128xf32>
    %10 = arith.subf %5, %9 : vector<1x16x128xf32>
    %c0_i32_0 = arith.constant 0 : i32
    %11 = vector.broadcast %c0_i32_0 : i32 to vector<1x16x128xi32>
    %12 = arith.cmpi eq, %1, %11 : vector<1x16x128xi32>
    %13 = arith.extui %12 : vector<1x16x128xi1> to vector<1x16x128xi32>
    %14 = arith.sitofp %13 : vector<1x16x128xi32> to vector<1x16x128xf32>
    %c127_i32 = arith.constant 127 : i32
    %15 = vector.broadcast %c127_i32 : i32 to vector<1x16x128xi32>
    %16 = arith.cmpi eq, %1, %15 : vector<1x16x128xi32>
    %17 = arith.extui %16 : vector<1x16x128xi1> to vector<1x16x128xi32>
    %18 = arith.sitofp %17 : vector<1x16x128xi32> to vector<1x16x128xf32>
    %19 = arith.subf %14, %18 : vector<1x16x128xf32>
    %c0_i32_1 = arith.constant 0 : i32
    %20 = arith.cmpi eq, %arg1, %c0_i32_1 : i32
    %21 = arith.extui %20 : i1 to i32
    %c0_i32_2 = arith.constant 0 : i32
    %22 = arith.cmpi ne, %21, %c0_i32_2 : i32
    scf.if %22 {
      %c0_133 = arith.constant 0 : index
      %c0_134 = arith.constant 0 : index
      %c0_135 = arith.constant 0 : index
      %c0_136 = arith.constant 0 : index
      %309 = vector.load %arg3[%c0_133, %c0_134, %c0_135, %c0_136] : memref<3x1x16x128xbf16, #tpu.memory_space<vmem>>, vector<1x1x16x128xbf16>
      %310 = vector.shape_cast %309 : vector<1x1x16x128xbf16> to vector<1x16x128xbf16>
      %311 = arith.extf %310 : vector<1x16x128xbf16> to vector<1x16x128xf32>
      %c1_i32_137 = arith.constant 1 : i32
      %312 = tpu.dynamic_rotate %311 by %c1_i32_137 dim 1 : vector<1x16x128xf32>, i32 -> vector<1x16x128xf32>
      %c15_i32_138 = arith.constant 15 : i32
      %313 = tpu.dynamic_rotate %311 by %c15_i32_138 dim 1 : vector<1x16x128xf32>, i32 -> vector<1x16x128xf32>
      %314 = arith.addf %312, %311 : vector<1x16x128xf32>
      %315 = arith.addf %314, %313 : vector<1x16x128xf32>
      %316 = arith.subf %313, %312 : vector<1x16x128xf32>
      %317 = arith.mulf %316, %10 : vector<1x16x128xf32>
      %318 = arith.addf %315, %317 : vector<1x16x128xf32>
      %c1_i32_139 = arith.constant 1 : i32
      %319 = tpu.dynamic_rotate %318 by %c1_i32_139 dim 2 : vector<1x16x128xf32>, i32 -> vector<1x16x128xf32>
      %c127_i32_140 = arith.constant 127 : i32
      %320 = tpu.dynamic_rotate %318 by %c127_i32_140 dim 2 : vector<1x16x128xf32>, i32 -> vector<1x16x128xf32>
      %321 = arith.addf %319, %318 : vector<1x16x128xf32>
      %322 = arith.addf %321, %320 : vector<1x16x128xf32>
      %323 = arith.subf %320, %319 : vector<1x16x128xf32>
      %324 = arith.mulf %323, %19 : vector<1x16x128xf32>
      %325 = arith.addf %322, %324 : vector<1x16x128xf32>
      %326 = arith.mulf %325, %325 : vector<1x16x128xf32>
      %c0_141 = arith.constant 0 : index
      %c0_142 = arith.constant 0 : index
      %c0_143 = arith.constant 0 : index
      %c0_144 = arith.constant 0 : index
      %327 = vector.load %arg6[%c0_141, %c0_142, %c0_143, %c0_144] : memref<3x1x16x128xf32, #tpu.memory_space<vmem>>, vector<1x1x16x128xf32>
      %328 = vector.shape_cast %327 : vector<1x1x16x128xf32> to vector<1x16x128xf32>
      %329 = vector.shape_cast %325 : vector<1x16x128xf32> to vector<1x1x16x128xf32>
      tpu.vector_store %arg6[%c0_141, %c0_142, %c0_143, %c0_144], %329 {strides = array<i32>} : memref<3x1x16x128xf32, #tpu.memory_space<vmem>>, vector<1x1x16x128xf32>,
      %cst_145 = arith.constant 8.100000e-03 : f32
      %330 = vector.broadcast %cst_145 : f32 to vector<1x16x128xf32>
      %331 = arith.addf %326, %330 : vector<1x16x128xf32>
      %c0_146 = arith.constant 0 : index
      %c0_147 = arith.constant 0 : index
      %c0_148 = arith.constant 0 : index
      %c0_149 = arith.constant 0 : index
      %332 = vector.load %arg7[%c0_146, %c0_147, %c0_148, %c0_149] : memref<3x1x16x128xf32, #tpu.memory_space<vmem>>, vector<1x1x16x128xf32>
      %333 = vector.shape_cast %332 : vector<1x1x16x128xf32> to vector<1x16x128xf32>
      %334 = vector.shape_cast %331 : vector<1x16x128xf32> to vector<1x1x16x128xf32>
      tpu.vector_store %arg7[%c0_146, %c0_147, %c0_148, %c0_149], %334 {strides = array<i32>} : memref<3x1x16x128xf32, #tpu.memory_space<vmem>>, vector<1x1x16x128xf32>,
      %335 = arith.mulf %311, %311 : vector<1x16x128xf32>
      %c1_i32_150 = arith.constant 1 : i32
      %336 = tpu.dynamic_rotate %335 by %c1_i32_150 dim 1 : vector<1x16x128xf32>, i32 -> vector<1x16x128xf32>
      %c15_i32_151 = arith.constant 15 : i32
      %337 = tpu.dynamic_rotate %335 by %c15_i32_151 dim 1 : vector<1x16x128xf32>, i32 -> vector<1x16x128xf32>
      %338 = arith.addf %336, %335 : vector<1x16x128xf32>
      %339 = arith.addf %338, %337 : vector<1x16x128xf32>
      %340 = arith.subf %337, %336 : vector<1x16x128xf32>
      %341 = arith.mulf %340, %10 : vector<1x16x128xf32>
      %342 = arith.addf %339, %341 : vector<1x16x128xf32>
      %c1_i32_152 = arith.constant 1 : i32
      %343 = tpu.dynamic_rotate %342 by %c1_i32_152 dim 2 : vector<1x16x128xf32>, i32 -> vector<1x16x128xf32>
      %c127_i32_153 = arith.constant 127 : i32
      %344 = tpu.dynamic_rotate %342 by %c127_i32_153 dim 2 : vector<1x16x128xf32>, i32 -> vector<1x16x128xf32>
      %345 = arith.addf %343, %342 : vector<1x16x128xf32>
      %346 = arith.addf %345, %344 : vector<1x16x128xf32>
      %347 = arith.subf %344, %343 : vector<1x16x128xf32>
      %348 = arith.mulf %347, %19 : vector<1x16x128xf32>
      %349 = arith.addf %346, %348 : vector<1x16x128xf32>
      %cst_154 = arith.constant 9.000000e+00 : f32
      %350 = vector.broadcast %cst_154 : f32 to vector<1x16x128xf32>
      %351 = arith.mulf %350, %349 : vector<1x16x128xf32>
      %352 = arith.subf %351, %326 : vector<1x16x128xf32>
      %cst_155 = arith.constant 7.290000e-02 : f32
      %353 = vector.broadcast %cst_155 : f32 to vector<1x16x128xf32>
      %354 = arith.addf %352, %353 : vector<1x16x128xf32>
      %c0_156 = arith.constant 0 : index
      %c0_157 = arith.constant 0 : index
      %c0_158 = arith.constant 0 : index
      %c0_159 = arith.constant 0 : index
      %355 = vector.load %arg8[%c0_156, %c0_157, %c0_158, %c0_159] : memref<3x1x16x128xf32, #tpu.memory_space<vmem>>, vector<1x1x16x128xf32>
      %356 = vector.shape_cast %355 : vector<1x1x16x128xf32> to vector<1x16x128xf32>
      %357 = vector.shape_cast %354 : vector<1x16x128xf32> to vector<1x1x16x128xf32>
      tpu.vector_store %arg8[%c0_156, %c0_157, %c0_158, %c0_159], %357 {strides = array<i32>} : memref<3x1x16x128xf32, #tpu.memory_space<vmem>>, vector<1x1x16x128xf32>,
      %c1_160 = arith.constant 1 : index
      %c0_161 = arith.constant 0 : index
      %c0_162 = arith.constant 0 : index
      %c0_163 = arith.constant 0 : index
      %358 = vector.load %arg3[%c1_160, %c0_161, %c0_162, %c0_163] : memref<3x1x16x128xbf16, #tpu.memory_space<vmem>>, vector<1x1x16x128xbf16>
      %359 = vector.shape_cast %358 : vector<1x1x16x128xbf16> to vector<1x16x128xbf16>
      %360 = arith.extf %359 : vector<1x16x128xbf16> to vector<1x16x128xf32>
      %c1_i32_164 = arith.constant 1 : i32
      %361 = tpu.dynamic_rotate %360 by %c1_i32_164 dim 1 : vector<1x16x128xf32>, i32 -> vector<1x16x128xf32>
      %c15_i32_165 = arith.constant 15 : i32
      %362 = tpu.dynamic_rotate %360 by %c15_i32_165 dim 1 : vector<1x16x128xf32>, i32 -> vector<1x16x128xf32>
      %363 = arith.addf %361, %360 : vector<1x16x128xf32>
      %364 = arith.addf %363, %362 : vector<1x16x128xf32>
      %365 = arith.subf %362, %361 : vector<1x16x128xf32>
      %366 = arith.mulf %365, %10 : vector<1x16x128xf32>
      %367 = arith.addf %364, %366 : vector<1x16x128xf32>
      %c1_i32_166 = arith.constant 1 : i32
      %368 = tpu.dynamic_rotate %367 by %c1_i32_166 dim 2 : vector<1x16x128xf32>, i32 -> vector<1x16x128xf32>
      %c127_i32_167 = arith.constant 127 : i32
      %369 = tpu.dynamic_rotate %367 by %c127_i32_167 dim 2 : vector<1x16x128xf32>, i32 -> vector<1x16x128xf32>
      %370 = arith.addf %368, %367 : vector<1x16x128xf32>
      %371 = arith.addf %370, %369 : vector<1x16x128xf32>
      %372 = arith.subf %369, %368 : vector<1x16x128xf32>
      %373 = arith.mulf %372, %19 : vector<1x16x128xf32>
      %374 = arith.addf %371, %373 : vector<1x16x128xf32>
      %375 = arith.mulf %374, %374 : vector<1x16x128xf32>
      %c1_168 = arith.constant 1 : index
      %c0_169 = arith.constant 0 : index
      %c0_170 = arith.constant 0 : index
      %c0_171 = arith.constant 0 : index
      %376 = vector.load %arg6[%c1_168, %c0_169, %c0_170, %c0_171] : memref<3x1x16x128xf32, #tpu.memory_space<vmem>>, vector<1x1x16x128xf32>
      %377 = vector.shape_cast %376 : vector<1x1x16x128xf32> to vector<1x16x128xf32>
      %378 = vector.shape_cast %374 : vector<1x16x128xf32> to vector<1x1x16x128xf32>
      tpu.vector_store %arg6[%c1_168, %c0_169, %c0_170, %c0_171], %378 {strides = array<i32>} : memref<3x1x16x128xf32, #tpu.memory_space<vmem>>, vector<1x1x16x128xf32>,
      %cst_172 = arith.constant 8.100000e-03 : f32
      %379 = vector.broadcast %cst_172 : f32 to vector<1x16x128xf32>
      %380 = arith.addf %375, %379 : vector<1x16x128xf32>
      %c1_173 = arith.constant 1 : index
      %c0_174 = arith.constant 0 : index
      %c0_175 = arith.constant 0 : index
      %c0_176 = arith.constant 0 : index
      %381 = vector.load %arg7[%c1_173, %c0_174, %c0_175, %c0_176] : memref<3x1x16x128xf32, #tpu.memory_space<vmem>>, vector<1x1x16x128xf32>
      %382 = vector.shape_cast %381 : vector<1x1x16x128xf32> to vector<1x16x128xf32>
      %383 = vector.shape_cast %380 : vector<1x16x128xf32> to vector<1x1x16x128xf32>
      tpu.vector_store %arg7[%c1_173, %c0_174, %c0_175, %c0_176], %383 {strides = array<i32>} : memref<3x1x16x128xf32, #tpu.memory_space<vmem>>, vector<1x1x16x128xf32>,
      %384 = arith.mulf %360, %360 : vector<1x16x128xf32>
      %c1_i32_177 = arith.constant 1 : i32
      %385 = tpu.dynamic_rotate %384 by %c1_i32_177 dim 1 : vector<1x16x128xf32>, i32 -> vector<1x16x128xf32>
      %c15_i32_178 = arith.constant 15 : i32
      %386 = tpu.dynamic_rotate %384 by %c15_i32_178 dim 1 : vector<1x16x128xf32>, i32 -> vector<1x16x128xf32>
      %387 = arith.addf %385, %384 : vector<1x16x128xf32>
      %388 = arith.addf %387, %386 : vector<1x16x128xf32>
      %389 = arith.subf %386, %385 : vector<1x16x128xf32>
      %390 = arith.mulf %389, %10 : vector<1x16x128xf32>
      %391 = arith.addf %388, %390 : vector<1x16x128xf32>
      %c1_i32_179 = arith.constant 1 : i32
      %392 = tpu.dynamic_rotate %391 by %c1_i32_179 dim 2 : vector<1x16x128xf32>, i32 -> vector<1x16x128xf32>
      %c127_i32_180 = arith.constant 127 : i32
      %393 = tpu.dynamic_rotate %391 by %c127_i32_180 dim 2 : vector<1x16x128xf32>, i32 -> vector<1x16x128xf32>
      %394 = arith.addf %392, %391 : vector<1x16x128xf32>
      %395 = arith.addf %394, %393 : vector<1x16x128xf32>
      %396 = arith.subf %393, %392 : vector<1x16x128xf32>
      %397 = arith.mulf %396, %19 : vector<1x16x128xf32>
      %398 = arith.addf %395, %397 : vector<1x16x128xf32>
      %cst_181 = arith.constant 9.000000e+00 : f32
      %399 = vector.broadcast %cst_181 : f32 to vector<1x16x128xf32>
      %400 = arith.mulf %399, %398 : vector<1x16x128xf32>
      %401 = arith.subf %400, %375 : vector<1x16x128xf32>
      %cst_182 = arith.constant 7.290000e-02 : f32
      %402 = vector.broadcast %cst_182 : f32 to vector<1x16x128xf32>
      %403 = arith.addf %401, %402 : vector<1x16x128xf32>
      %c1_183 = arith.constant 1 : index
      %c0_184 = arith.constant 0 : index
      %c0_185 = arith.constant 0 : index
      %c0_186 = arith.constant 0 : index
      %404 = vector.load %arg8[%c1_183, %c0_184, %c0_185, %c0_186] : memref<3x1x16x128xf32, #tpu.memory_space<vmem>>, vector<1x1x16x128xf32>
      %405 = vector.shape_cast %404 : vector<1x1x16x128xf32> to vector<1x16x128xf32>
      %406 = vector.shape_cast %403 : vector<1x16x128xf32> to vector<1x1x16x128xf32>
      tpu.vector_store %arg8[%c1_183, %c0_184, %c0_185, %c0_186], %406 {strides = array<i32>} : memref<3x1x16x128xf32, #tpu.memory_space<vmem>>, vector<1x1x16x128xf32>,
      %c2_187 = arith.constant 2 : index
      %c0_188 = arith.constant 0 : index
      %c0_189 = arith.constant 0 : index
      %c0_190 = arith.constant 0 : index
      %407 = vector.load %arg3[%c2_187, %c0_188, %c0_189, %c0_190] : memref<3x1x16x128xbf16, #tpu.memory_space<vmem>>, vector<1x1x16x128xbf16>
      %408 = vector.shape_cast %407 : vector<1x1x16x128xbf16> to vector<1x16x128xbf16>
      %409 = arith.extf %408 : vector<1x16x128xbf16> to vector<1x16x128xf32>
      %c1_i32_191 = arith.constant 1 : i32
      %410 = tpu.dynamic_rotate %409 by %c1_i32_191 dim 1 : vector<1x16x128xf32>, i32 -> vector<1x16x128xf32>
      %c15_i32_192 = arith.constant 15 : i32
      %411 = tpu.dynamic_rotate %409 by %c15_i32_192 dim 1 : vector<1x16x128xf32>, i32 -> vector<1x16x128xf32>
      %412 = arith.addf %410, %409 : vector<1x16x128xf32>
      %413 = arith.addf %412, %411 : vector<1x16x128xf32>
      %414 = arith.subf %411, %410 : vector<1x16x128xf32>
      %415 = arith.mulf %414, %10 : vector<1x16x128xf32>
      %416 = arith.addf %413, %415 : vector<1x16x128xf32>
      %c1_i32_193 = arith.constant 1 : i32
      %417 = tpu.dynamic_rotate %416 by %c1_i32_193 dim 2 : vector<1x16x128xf32>, i32 -> vector<1x16x128xf32>
      %c127_i32_194 = arith.constant 127 : i32
      %418 = tpu.dynamic_rotate %416 by %c127_i32_194 dim 2 : vector<1x16x128xf32>, i32 -> vector<1x16x128xf32>
      %419 = arith.addf %417, %416 : vector<1x16x128xf32>
      %420 = arith.addf %419, %418 : vector<1x16x128xf32>
      %421 = arith.subf %418, %417 : vector<1x16x128xf32>
      %422 = arith.mulf %421, %19 : vector<1x16x128xf32>
      %423 = arith.addf %420, %422 : vector<1x16x128xf32>
      %424 = arith.mulf %423, %423 : vector<1x16x128xf32>
      %c2_195 = arith.constant 2 : index
      %c0_196 = arith.constant 0 : index
      %c0_197 = arith.constant 0 : index
      %c0_198 = arith.constant 0 : index
      %425 = vector.load %arg6[%c2_195, %c0_196, %c0_197, %c0_198] : memref<3x1x16x128xf32, #tpu.memory_space<vmem>>, vector<1x1x16x128xf32>
      %426 = vector.shape_cast %425 : vector<1x1x16x128xf32> to vector<1x16x128xf32>
      %427 = vector.shape_cast %423 : vector<1x16x128xf32> to vector<1x1x16x128xf32>
      tpu.vector_store %arg6[%c2_195, %c0_196, %c0_197, %c0_198], %427 {strides = array<i32>} : memref<3x1x16x128xf32, #tpu.memory_space<vmem>>, vector<1x1x16x128xf32>,
      %cst_199 = arith.constant 8.100000e-03 : f32
      %428 = vector.broadcast %cst_199 : f32 to vector<1x16x128xf32>
      %429 = arith.addf %424, %428 : vector<1x16x128xf32>
      %c2_200 = arith.constant 2 : index
      %c0_201 = arith.constant 0 : index
      %c0_202 = arith.constant 0 : index
      %c0_203 = arith.constant 0 : index
      %430 = vector.load %arg7[%c2_200, %c0_201, %c0_202, %c0_203] : memref<3x1x16x128xf32, #tpu.memory_space<vmem>>, vector<1x1x16x128xf32>
      %431 = vector.shape_cast %430 : vector<1x1x16x128xf32> to vector<1x16x128xf32>
      %432 = vector.shape_cast %429 : vector<1x16x128xf32> to vector<1x1x16x128xf32>
      tpu.vector_store %arg7[%c2_200, %c0_201, %c0_202, %c0_203], %432 {strides = array<i32>} : memref<3x1x16x128xf32, #tpu.memory_space<vmem>>, vector<1x1x16x128xf32>,
      %433 = arith.mulf %409, %409 : vector<1x16x128xf32>
      %c1_i32_204 = arith.constant 1 : i32
      %434 = tpu.dynamic_rotate %433 by %c1_i32_204 dim 1 : vector<1x16x128xf32>, i32 -> vector<1x16x128xf32>
      %c15_i32_205 = arith.constant 15 : i32
      %435 = tpu.dynamic_rotate %433 by %c15_i32_205 dim 1 : vector<1x16x128xf32>, i32 -> vector<1x16x128xf32>
      %436 = arith.addf %434, %433 : vector<1x16x128xf32>
      %437 = arith.addf %436, %435 : vector<1x16x128xf32>
      %438 = arith.subf %435, %434 : vector<1x16x128xf32>
      %439 = arith.mulf %438, %10 : vector<1x16x128xf32>
      %440 = arith.addf %437, %439 : vector<1x16x128xf32>
      %c1_i32_206 = arith.constant 1 : i32
      %441 = tpu.dynamic_rotate %440 by %c1_i32_206 dim 2 : vector<1x16x128xf32>, i32 -> vector<1x16x128xf32>
      %c127_i32_207 = arith.constant 127 : i32
      %442 = tpu.dynamic_rotate %440 by %c127_i32_207 dim 2 : vector<1x16x128xf32>, i32 -> vector<1x16x128xf32>
      %443 = arith.addf %441, %440 : vector<1x16x128xf32>
      %444 = arith.addf %443, %442 : vector<1x16x128xf32>
      %445 = arith.subf %442, %441 : vector<1x16x128xf32>
      %446 = arith.mulf %445, %19 : vector<1x16x128xf32>
      %447 = arith.addf %444, %446 : vector<1x16x128xf32>
      %cst_208 = arith.constant 9.000000e+00 : f32
      %448 = vector.broadcast %cst_208 : f32 to vector<1x16x128xf32>
      %449 = arith.mulf %448, %447 : vector<1x16x128xf32>
      %450 = arith.subf %449, %424 : vector<1x16x128xf32>
      %cst_209 = arith.constant 7.290000e-02 : f32
      %451 = vector.broadcast %cst_209 : f32 to vector<1x16x128xf32>
      %452 = arith.addf %450, %451 : vector<1x16x128xf32>
      %c2_210 = arith.constant 2 : index
      %c0_211 = arith.constant 0 : index
      %c0_212 = arith.constant 0 : index
      %c0_213 = arith.constant 0 : index
      %453 = vector.load %arg8[%c2_210, %c0_211, %c0_212, %c0_213] : memref<3x1x16x128xf32, #tpu.memory_space<vmem>>, vector<1x1x16x128xf32>
      %454 = vector.shape_cast %453 : vector<1x1x16x128xf32> to vector<1x16x128xf32>
      %455 = vector.shape_cast %452 : vector<1x16x128xf32> to vector<1x1x16x128xf32>
      tpu.vector_store %arg8[%c2_210, %c0_211, %c0_212, %c0_213], %455 {strides = array<i32>} : memref<3x1x16x128xf32, #tpu.memory_space<vmem>>, vector<1x1x16x128xf32>,
    } else {
    }
    %cst = arith.constant 0.000000e+00 : f32
    %23 = vector.broadcast %cst : f32 to vector<1x16x128xf32>
    %cst_3 = arith.constant 0.000000e+00 : f32
    %24 = vector.broadcast %cst_3 : f32 to vector<1x16x128xf32>
    %c0 = arith.constant 0 : index
    %c0_4 = arith.constant 0 : index
    %c0_5 = arith.constant 0 : index
    %c0_6 = arith.constant 0 : index
    %25 = vector.load %arg2[%c0, %c0_4, %c0_5, %c0_6] : memref<3x1x16x128xbf16, #tpu.memory_space<vmem>>, vector<1x1x16x128xbf16>
    %26 = vector.shape_cast %25 : vector<1x1x16x128xbf16> to vector<1x16x128xbf16>
    %27 = arith.extf %26 : vector<1x16x128xbf16> to vector<1x16x128xf32>
    %c0_7 = arith.constant 0 : index
    %c0_8 = arith.constant 0 : index
    %c0_9 = arith.constant 0 : index
    %c0_10 = arith.constant 0 : index
    %28 = vector.load %arg3[%c0_7, %c0_8, %c0_9, %c0_10] : memref<3x1x16x128xbf16, #tpu.memory_space<vmem>>, vector<1x1x16x128xbf16>
    %29 = vector.shape_cast %28 : vector<1x1x16x128xbf16> to vector<1x16x128xbf16>
    %30 = arith.extf %29 : vector<1x16x128xbf16> to vector<1x16x128xf32>
    %31 = arith.subf %27, %30 : vector<1x16x128xf32>
    %32 = math.absf %31 : vector<1x16x128xf32>
    %33 = arith.addf %23, %32 : vector<1x16x128xf32>
    %c1_i32 = arith.constant 1 : i32
    %34 = tpu.dynamic_rotate %27 by %c1_i32 dim 1 : vector<1x16x128xf32>, i32 -> vector<1x16x128xf32>
    %c15_i32_11 = arith.constant 15 : i32
    %35 = tpu.dynamic_rotate %27 by %c15_i32_11 dim 1 : vector<1x16x128xf32>, i32 -> vector<1x16x128xf32>
    %36 = arith.addf %34, %27 : vector<1x16x128xf32>
    %37 = arith.addf %36, %35 : vector<1x16x128xf32>
    %38 = arith.subf %35, %34 : vector<1x16x128xf32>
    %39 = arith.mulf %38, %10 : vector<1x16x128xf32>
    %40 = arith.addf %37, %39 : vector<1x16x128xf32>
    %c1_i32_12 = arith.constant 1 : i32
    %41 = tpu.dynamic_rotate %40 by %c1_i32_12 dim 2 : vector<1x16x128xf32>, i32 -> vector<1x16x128xf32>
    %c127_i32_13 = arith.constant 127 : i32
    %42 = tpu.dynamic_rotate %40 by %c127_i32_13 dim 2 : vector<1x16x128xf32>, i32 -> vector<1x16x128xf32>
    %43 = arith.addf %41, %40 : vector<1x16x128xf32>
    %44 = arith.addf %43, %42 : vector<1x16x128xf32>
    %45 = arith.subf %42, %41 : vector<1x16x128xf32>
    %46 = arith.mulf %45, %19 : vector<1x16x128xf32>
    %47 = arith.addf %44, %46 : vector<1x16x128xf32>
    %48 = arith.mulf %47, %47 : vector<1x16x128xf32>
    %c0_14 = arith.constant 0 : index
    %c0_15 = arith.constant 0 : index
    %c0_16 = arith.constant 0 : index
    %c0_17 = arith.constant 0 : index
    %49 = vector.load %arg6[%c0_14, %c0_15, %c0_16, %c0_17] : memref<3x1x16x128xf32, #tpu.memory_space<vmem>>, vector<1x1x16x128xf32>
    %50 = vector.shape_cast %49 : vector<1x1x16x128xf32> to vector<1x16x128xf32>
    %51 = arith.mulf %47, %50 : vector<1x16x128xf32>
    %52 = arith.mulf %27, %27 : vector<1x16x128xf32>
    %c1_i32_18 = arith.constant 1 : i32
    %53 = tpu.dynamic_rotate %52 by %c1_i32_18 dim 1 : vector<1x16x128xf32>, i32 -> vector<1x16x128xf32>
    %c15_i32_19 = arith.constant 15 : i32
    %54 = tpu.dynamic_rotate %52 by %c15_i32_19 dim 1 : vector<1x16x128xf32>, i32 -> vector<1x16x128xf32>
    %55 = arith.addf %53, %52 : vector<1x16x128xf32>
    %56 = arith.addf %55, %54 : vector<1x16x128xf32>
    %57 = arith.subf %54, %53 : vector<1x16x128xf32>
    %58 = arith.mulf %57, %10 : vector<1x16x128xf32>
    %59 = arith.addf %56, %58 : vector<1x16x128xf32>
    %c1_i32_20 = arith.constant 1 : i32
    %60 = tpu.dynamic_rotate %59 by %c1_i32_20 dim 2 : vector<1x16x128xf32>, i32 -> vector<1x16x128xf32>
    %c127_i32_21 = arith.constant 127 : i32
    %61 = tpu.dynamic_rotate %59 by %c127_i32_21 dim 2 : vector<1x16x128xf32>, i32 -> vector<1x16x128xf32>
    %62 = arith.addf %60, %59 : vector<1x16x128xf32>
    %63 = arith.addf %62, %61 : vector<1x16x128xf32>
    %64 = arith.subf %61, %60 : vector<1x16x128xf32>
    %65 = arith.mulf %64, %19 : vector<1x16x128xf32>
    %66 = arith.addf %63, %65 : vector<1x16x128xf32>
    %cst_22 = arith.constant 9.000000e+00 : f32
    %67 = vector.broadcast %cst_22 : f32 to vector<1x16x128xf32>
    %68 = arith.mulf %67, %66 : vector<1x16x128xf32>
    %69 = arith.subf %68, %48 : vector<1x16x128xf32>
    %70 = arith.mulf %27, %30 : vector<1x16x128xf32>
    %c1_i32_23 = arith.constant 1 : i32
    %71 = tpu.dynamic_rotate %70 by %c1_i32_23 dim 1 : vector<1x16x128xf32>, i32 -> vector<1x16x128xf32>
    %c15_i32_24 = arith.constant 15 : i32
    %72 = tpu.dynamic_rotate %70 by %c15_i32_24 dim 1 : vector<1x16x128xf32>, i32 -> vector<1x16x128xf32>
    %73 = arith.addf %71, %70 : vector<1x16x128xf32>
    %74 = arith.addf %73, %72 : vector<1x16x128xf32>
    %75 = arith.subf %72, %71 : vector<1x16x128xf32>
    %76 = arith.mulf %75, %10 : vector<1x16x128xf32>
    %77 = arith.addf %74, %76 : vector<1x16x128xf32>
    %c1_i32_25 = arith.constant 1 : i32
    %78 = tpu.dynamic_rotate %77 by %c1_i32_25 dim 2 : vector<1x16x128xf32>, i32 -> vector<1x16x128xf32>
    %c127_i32_26 = arith.constant 127 : i32
    %79 = tpu.dynamic_rotate %77 by %c127_i32_26 dim 2 : vector<1x16x128xf32>, i32 -> vector<1x16x128xf32>
    %80 = arith.addf %78, %77 : vector<1x16x128xf32>
    %81 = arith.addf %80, %79 : vector<1x16x128xf32>
    %82 = arith.subf %79, %78 : vector<1x16x128xf32>
    %83 = arith.mulf %82, %19 : vector<1x16x128xf32>
    %84 = arith.addf %81, %83 : vector<1x16x128xf32>
    %cst_27 = arith.constant 9.000000e+00 : f32
    %85 = vector.broadcast %cst_27 : f32 to vector<1x16x128xf32>
    %86 = arith.mulf %85, %84 : vector<1x16x128xf32>
    %87 = arith.subf %86, %51 : vector<1x16x128xf32>
    %cst_28 = arith.constant 2.000000e+00 : f32
    %88 = vector.broadcast %cst_28 : f32 to vector<1x16x128xf32>
    %89 = arith.mulf %88, %87 : vector<1x16x128xf32>
    %cst_29 = arith.constant 7.290000e-02 : f32
    %90 = vector.broadcast %cst_29 : f32 to vector<1x16x128xf32>
    %91 = arith.addf %89, %90 : vector<1x16x128xf32>
    %c0_30 = arith.constant 0 : index
    %c0_31 = arith.constant 0 : index
    %c0_32 = arith.constant 0 : index
    %c0_33 = arith.constant 0 : index
    %92 = vector.load %arg8[%c0_30, %c0_31, %c0_32, %c0_33] : memref<3x1x16x128xf32, #tpu.memory_space<vmem>>, vector<1x1x16x128xf32>
    %93 = vector.shape_cast %92 : vector<1x1x16x128xf32> to vector<1x16x128xf32>
    %94 = arith.addf %69, %93 : vector<1x16x128xf32>
    %cst_34 = arith.constant 2.000000e+00 : f32
    %95 = vector.broadcast %cst_34 : f32 to vector<1x16x128xf32>
    %96 = arith.mulf %95, %51 : vector<1x16x128xf32>
    %cst_35 = arith.constant 8.100000e-03 : f32
    %97 = vector.broadcast %cst_35 : f32 to vector<1x16x128xf32>
    %98 = arith.addf %96, %97 : vector<1x16x128xf32>
    %99 = arith.mulf %98, %91 : vector<1x16x128xf32>
    %c0_36 = arith.constant 0 : index
    %c0_37 = arith.constant 0 : index
    %c0_38 = arith.constant 0 : index
    %c0_39 = arith.constant 0 : index
    %100 = vector.load %arg7[%c0_36, %c0_37, %c0_38, %c0_39] : memref<3x1x16x128xf32, #tpu.memory_space<vmem>>, vector<1x1x16x128xf32>
    %101 = vector.shape_cast %100 : vector<1x1x16x128xf32> to vector<1x16x128xf32>
    %102 = arith.addf %48, %101 : vector<1x16x128xf32>
    %103 = arith.mulf %102, %94 : vector<1x16x128xf32>
    %104 = tpu.reciprocal %103 {approx = true} : vector<1x16x128xf32> -> vector<1x16x128xf32>
    %105 = arith.mulf %99, %104 : vector<1x16x128xf32>
    %cst_40 = arith.constant 1.000000e+00 : f32
    %106 = vector.broadcast %cst_40 : f32 to vector<1x16x128xf32>
    %107 = arith.subf %106, %105 : vector<1x16x128xf32>
    %cst_41 = arith.constant 5.000000e-01 : f32
    %108 = vector.broadcast %cst_41 : f32 to vector<1x16x128xf32>
    %109 = arith.mulf %107, %108 : vector<1x16x128xf32>
    %cst_42 = arith.constant 0.000000e+00 : f32
    %cst_43 = arith.constant 1.000000e+00 : f32
    %110 = vector.broadcast %cst_42 : f32 to vector<1x16x128xf32>
    %111 = arith.maximumf %110, %109 : vector<1x16x128xf32>
    %112 = vector.broadcast %cst_43 : f32 to vector<1x16x128xf32>
    %113 = arith.minimumf %112, %111 : vector<1x16x128xf32>
    %114 = arith.addf %24, %113 : vector<1x16x128xf32>
    %c1 = arith.constant 1 : index
    %c0_44 = arith.constant 0 : index
    %c0_45 = arith.constant 0 : index
    %c0_46 = arith.constant 0 : index
    %115 = vector.load %arg2[%c1, %c0_44, %c0_45, %c0_46] : memref<3x1x16x128xbf16, #tpu.memory_space<vmem>>, vector<1x1x16x128xbf16>
    %116 = vector.shape_cast %115 : vector<1x1x16x128xbf16> to vector<1x16x128xbf16>
    %117 = arith.extf %116 : vector<1x16x128xbf16> to vector<1x16x128xf32>
    %c1_47 = arith.constant 1 : index
    %c0_48 = arith.constant 0 : index
    %c0_49 = arith.constant 0 : index
    %c0_50 = arith.constant 0 : index
    %118 = vector.load %arg3[%c1_47, %c0_48, %c0_49, %c0_50] : memref<3x1x16x128xbf16, #tpu.memory_space<vmem>>, vector<1x1x16x128xbf16>
    %119 = vector.shape_cast %118 : vector<1x1x16x128xbf16> to vector<1x16x128xbf16>
    %120 = arith.extf %119 : vector<1x16x128xbf16> to vector<1x16x128xf32>
    %121 = arith.subf %117, %120 : vector<1x16x128xf32>
    %122 = math.absf %121 : vector<1x16x128xf32>
    %123 = arith.addf %33, %122 : vector<1x16x128xf32>
    %c1_i32_51 = arith.constant 1 : i32
    %124 = tpu.dynamic_rotate %117 by %c1_i32_51 dim 1 : vector<1x16x128xf32>, i32 -> vector<1x16x128xf32>
    %c15_i32_52 = arith.constant 15 : i32
    %125 = tpu.dynamic_rotate %117 by %c15_i32_52 dim 1 : vector<1x16x128xf32>, i32 -> vector<1x16x128xf32>
    %126 = arith.addf %124, %117 : vector<1x16x128xf32>
    %127 = arith.addf %126, %125 : vector<1x16x128xf32>
    %128 = arith.subf %125, %124 : vector<1x16x128xf32>
    %129 = arith.mulf %128, %10 : vector<1x16x128xf32>
    %130 = arith.addf %127, %129 : vector<1x16x128xf32>
    %c1_i32_53 = arith.constant 1 : i32
    %131 = tpu.dynamic_rotate %130 by %c1_i32_53 dim 2 : vector<1x16x128xf32>, i32 -> vector<1x16x128xf32>
    %c127_i32_54 = arith.constant 127 : i32
    %132 = tpu.dynamic_rotate %130 by %c127_i32_54 dim 2 : vector<1x16x128xf32>, i32 -> vector<1x16x128xf32>
    %133 = arith.addf %131, %130 : vector<1x16x128xf32>
    %134 = arith.addf %133, %132 : vector<1x16x128xf32>
    %135 = arith.subf %132, %131 : vector<1x16x128xf32>
    %136 = arith.mulf %135, %19 : vector<1x16x128xf32>
    %137 = arith.addf %134, %136 : vector<1x16x128xf32>
    %138 = arith.mulf %137, %137 : vector<1x16x128xf32>
    %c1_55 = arith.constant 1 : index
    %c0_56 = arith.constant 0 : index
    %c0_57 = arith.constant 0 : index
    %c0_58 = arith.constant 0 : index
    %139 = vector.load %arg6[%c1_55, %c0_56, %c0_57, %c0_58] : memref<3x1x16x128xf32, #tpu.memory_space<vmem>>, vector<1x1x16x128xf32>
    %140 = vector.shape_cast %139 : vector<1x1x16x128xf32> to vector<1x16x128xf32>
    %141 = arith.mulf %137, %140 : vector<1x16x128xf32>
    %142 = arith.mulf %117, %117 : vector<1x16x128xf32>
    %c1_i32_59 = arith.constant 1 : i32
    %143 = tpu.dynamic_rotate %142 by %c1_i32_59 dim 1 : vector<1x16x128xf32>, i32 -> vector<1x16x128xf32>
    %c15_i32_60 = arith.constant 15 : i32
    %144 = tpu.dynamic_rotate %142 by %c15_i32_60 dim 1 : vector<1x16x128xf32>, i32 -> vector<1x16x128xf32>
    %145 = arith.addf %143, %142 : vector<1x16x128xf32>
    %146 = arith.addf %145, %144 : vector<1x16x128xf32>
    %147 = arith.subf %144, %143 : vector<1x16x128xf32>
    %148 = arith.mulf %147, %10 : vector<1x16x128xf32>
    %149 = arith.addf %146, %148 : vector<1x16x128xf32>
    %c1_i32_61 = arith.constant 1 : i32
    %150 = tpu.dynamic_rotate %149 by %c1_i32_61 dim 2 : vector<1x16x128xf32>, i32 -> vector<1x16x128xf32>
    %c127_i32_62 = arith.constant 127 : i32
    %151 = tpu.dynamic_rotate %149 by %c127_i32_62 dim 2 : vector<1x16x128xf32>, i32 -> vector<1x16x128xf32>
    %152 = arith.addf %150, %149 : vector<1x16x128xf32>
    %153 = arith.addf %152, %151 : vector<1x16x128xf32>
    %154 = arith.subf %151, %150 : vector<1x16x128xf32>
    %155 = arith.mulf %154, %19 : vector<1x16x128xf32>
    %156 = arith.addf %153, %155 : vector<1x16x128xf32>
    %cst_63 = arith.constant 9.000000e+00 : f32
    %157 = vector.broadcast %cst_63 : f32 to vector<1x16x128xf32>
    %158 = arith.mulf %157, %156 : vector<1x16x128xf32>
    %159 = arith.subf %158, %138 : vector<1x16x128xf32>
    %160 = arith.mulf %117, %120 : vector<1x16x128xf32>
    %c1_i32_64 = arith.constant 1 : i32
    %161 = tpu.dynamic_rotate %160 by %c1_i32_64 dim 1 : vector<1x16x128xf32>, i32 -> vector<1x16x128xf32>
    %c15_i32_65 = arith.constant 15 : i32
    %162 = tpu.dynamic_rotate %160 by %c15_i32_65 dim 1 : vector<1x16x128xf32>, i32 -> vector<1x16x128xf32>
    %163 = arith.addf %161, %160 : vector<1x16x128xf32>
    %164 = arith.addf %163, %162 : vector<1x16x128xf32>
    %165 = arith.subf %162, %161 : vector<1x16x128xf32>
    %166 = arith.mulf %165, %10 : vector<1x16x128xf32>
    %167 = arith.addf %164, %166 : vector<1x16x128xf32>
    %c1_i32_66 = arith.constant 1 : i32
    %168 = tpu.dynamic_rotate %167 by %c1_i32_66 dim 2 : vector<1x16x128xf32>, i32 -> vector<1x16x128xf32>
    %c127_i32_67 = arith.constant 127 : i32
    %169 = tpu.dynamic_rotate %167 by %c127_i32_67 dim 2 : vector<1x16x128xf32>, i32 -> vector<1x16x128xf32>
    %170 = arith.addf %168, %167 : vector<1x16x128xf32>
    %171 = arith.addf %170, %169 : vector<1x16x128xf32>
    %172 = arith.subf %169, %168 : vector<1x16x128xf32>
    %173 = arith.mulf %172, %19 : vector<1x16x128xf32>
    %174 = arith.addf %171, %173 : vector<1x16x128xf32>
    %cst_68 = arith.constant 9.000000e+00 : f32
    %175 = vector.broadcast %cst_68 : f32 to vector<1x16x128xf32>
    %176 = arith.mulf %175, %174 : vector<1x16x128xf32>
    %177 = arith.subf %176, %141 : vector<1x16x128xf32>
    %cst_69 = arith.constant 2.000000e+00 : f32
    %178 = vector.broadcast %cst_69 : f32 to vector<1x16x128xf32>
    %179 = arith.mulf %178, %177 : vector<1x16x128xf32>
    %cst_70 = arith.constant 7.290000e-02 : f32
    %180 = vector.broadcast %cst_70 : f32 to vector<1x16x128xf32>
    %181 = arith.addf %179, %180 : vector<1x16x128xf32>
    %c1_71 = arith.constant 1 : index
    %c0_72 = arith.constant 0 : index
    %c0_73 = arith.constant 0 : index
    %c0_74 = arith.constant 0 : index
    %182 = vector.load %arg8[%c1_71, %c0_72, %c0_73, %c0_74] : memref<3x1x16x128xf32, #tpu.memory_space<vmem>>, vector<1x1x16x128xf32>
    %183 = vector.shape_cast %182 : vector<1x1x16x128xf32> to vector<1x16x128xf32>
    %184 = arith.addf %159, %183 : vector<1x16x128xf32>
    %cst_75 = arith.constant 2.000000e+00 : f32
    %185 = vector.broadcast %cst_75 : f32 to vector<1x16x128xf32>
    %186 = arith.mulf %185, %141 : vector<1x16x128xf32>
    %cst_76 = arith.constant 8.100000e-03 : f32
    %187 = vector.broadcast %cst_76 : f32 to vector<1x16x128xf32>
    %188 = arith.addf %186, %187 : vector<1x16x128xf32>
    %189 = arith.mulf %188, %181 : vector<1x16x128xf32>
    %c1_77 = arith.constant 1 : index
    %c0_78 = arith.constant 0 : index
    %c0_79 = arith.constant 0 : index
    %c0_80 = arith.constant 0 : index
    %190 = vector.load %arg7[%c1_77, %c0_78, %c0_79, %c0_80] : memref<3x1x16x128xf32, #tpu.memory_space<vmem>>, vector<1x1x16x128xf32>
    %191 = vector.shape_cast %190 : vector<1x1x16x128xf32> to vector<1x16x128xf32>
    %192 = arith.addf %138, %191 : vector<1x16x128xf32>
    %193 = arith.mulf %192, %184 : vector<1x16x128xf32>
    %194 = tpu.reciprocal %193 {approx = true} : vector<1x16x128xf32> -> vector<1x16x128xf32>
    %195 = arith.mulf %189, %194 : vector<1x16x128xf32>
    %cst_81 = arith.constant 1.000000e+00 : f32
    %196 = vector.broadcast %cst_81 : f32 to vector<1x16x128xf32>
    %197 = arith.subf %196, %195 : vector<1x16x128xf32>
    %cst_82 = arith.constant 5.000000e-01 : f32
    %198 = vector.broadcast %cst_82 : f32 to vector<1x16x128xf32>
    %199 = arith.mulf %197, %198 : vector<1x16x128xf32>
    %cst_83 = arith.constant 0.000000e+00 : f32
    %cst_84 = arith.constant 1.000000e+00 : f32
    %200 = vector.broadcast %cst_83 : f32 to vector<1x16x128xf32>
    %201 = arith.maximumf %200, %199 : vector<1x16x128xf32>
    %202 = vector.broadcast %cst_84 : f32 to vector<1x16x128xf32>
    %203 = arith.minimumf %202, %201 : vector<1x16x128xf32>
    %204 = arith.addf %114, %203 : vector<1x16x128xf32>
    %c2 = arith.constant 2 : index
    %c0_85 = arith.constant 0 : index
    %c0_86 = arith.constant 0 : index
    %c0_87 = arith.constant 0 : index
    %205 = vector.load %arg2[%c2, %c0_85, %c0_86, %c0_87] : memref<3x1x16x128xbf16, #tpu.memory_space<vmem>>, vector<1x1x16x128xbf16>
    %206 = vector.shape_cast %205 : vector<1x1x16x128xbf16> to vector<1x16x128xbf16>
    %207 = arith.extf %206 : vector<1x16x128xbf16> to vector<1x16x128xf32>
    %c2_88 = arith.constant 2 : index
    %c0_89 = arith.constant 0 : index
    %c0_90 = arith.constant 0 : index
    %c0_91 = arith.constant 0 : index
    %208 = vector.load %arg3[%c2_88, %c0_89, %c0_90, %c0_91] : memref<3x1x16x128xbf16, #tpu.memory_space<vmem>>, vector<1x1x16x128xbf16>
    %209 = vector.shape_cast %208 : vector<1x1x16x128xbf16> to vector<1x16x128xbf16>
    %210 = arith.extf %209 : vector<1x16x128xbf16> to vector<1x16x128xf32>
    %211 = arith.subf %207, %210 : vector<1x16x128xf32>
    %212 = math.absf %211 : vector<1x16x128xf32>
    %213 = arith.addf %123, %212 : vector<1x16x128xf32>
    %c1_i32_92 = arith.constant 1 : i32
    %214 = tpu.dynamic_rotate %207 by %c1_i32_92 dim 1 : vector<1x16x128xf32>, i32 -> vector<1x16x128xf32>
    %c15_i32_93 = arith.constant 15 : i32
    %215 = tpu.dynamic_rotate %207 by %c15_i32_93 dim 1 : vector<1x16x128xf32>, i32 -> vector<1x16x128xf32>
    %216 = arith.addf %214, %207 : vector<1x16x128xf32>
    %217 = arith.addf %216, %215 : vector<1x16x128xf32>
    %218 = arith.subf %215, %214 : vector<1x16x128xf32>
    %219 = arith.mulf %218, %10 : vector<1x16x128xf32>
    %220 = arith.addf %217, %219 : vector<1x16x128xf32>
    %c1_i32_94 = arith.constant 1 : i32
    %221 = tpu.dynamic_rotate %220 by %c1_i32_94 dim 2 : vector<1x16x128xf32>, i32 -> vector<1x16x128xf32>
    %c127_i32_95 = arith.constant 127 : i32
    %222 = tpu.dynamic_rotate %220 by %c127_i32_95 dim 2 : vector<1x16x128xf32>, i32 -> vector<1x16x128xf32>
    %223 = arith.addf %221, %220 : vector<1x16x128xf32>
    %224 = arith.addf %223, %222 : vector<1x16x128xf32>
    %225 = arith.subf %222, %221 : vector<1x16x128xf32>
    %226 = arith.mulf %225, %19 : vector<1x16x128xf32>
    %227 = arith.addf %224, %226 : vector<1x16x128xf32>
    %228 = arith.mulf %227, %227 : vector<1x16x128xf32>
    %c2_96 = arith.constant 2 : index
    %c0_97 = arith.constant 0 : index
    %c0_98 = arith.constant 0 : index
    %c0_99 = arith.constant 0 : index
    %229 = vector.load %arg6[%c2_96, %c0_97, %c0_98, %c0_99] : memref<3x1x16x128xf32, #tpu.memory_space<vmem>>, vector<1x1x16x128xf32>
    %230 = vector.shape_cast %229 : vector<1x1x16x128xf32> to vector<1x16x128xf32>
    %231 = arith.mulf %227, %230 : vector<1x16x128xf32>
    %232 = arith.mulf %207, %207 : vector<1x16x128xf32>
    %c1_i32_100 = arith.constant 1 : i32
    %233 = tpu.dynamic_rotate %232 by %c1_i32_100 dim 1 : vector<1x16x128xf32>, i32 -> vector<1x16x128xf32>
    %c15_i32_101 = arith.constant 15 : i32
    %234 = tpu.dynamic_rotate %232 by %c15_i32_101 dim 1 : vector<1x16x128xf32>, i32 -> vector<1x16x128xf32>
    %235 = arith.addf %233, %232 : vector<1x16x128xf32>
    %236 = arith.addf %235, %234 : vector<1x16x128xf32>
    %237 = arith.subf %234, %233 : vector<1x16x128xf32>
    %238 = arith.mulf %237, %10 : vector<1x16x128xf32>
    %239 = arith.addf %236, %238 : vector<1x16x128xf32>
    %c1_i32_102 = arith.constant 1 : i32
    %240 = tpu.dynamic_rotate %239 by %c1_i32_102 dim 2 : vector<1x16x128xf32>, i32 -> vector<1x16x128xf32>
    %c127_i32_103 = arith.constant 127 : i32
    %241 = tpu.dynamic_rotate %239 by %c127_i32_103 dim 2 : vector<1x16x128xf32>, i32 -> vector<1x16x128xf32>
    %242 = arith.addf %240, %239 : vector<1x16x128xf32>
    %243 = arith.addf %242, %241 : vector<1x16x128xf32>
    %244 = arith.subf %241, %240 : vector<1x16x128xf32>
    %245 = arith.mulf %244, %19 : vector<1x16x128xf32>
    %246 = arith.addf %243, %245 : vector<1x16x128xf32>
    %cst_104 = arith.constant 9.000000e+00 : f32
    %247 = vector.broadcast %cst_104 : f32 to vector<1x16x128xf32>
    %248 = arith.mulf %247, %246 : vector<1x16x128xf32>
    %249 = arith.subf %248, %228 : vector<1x16x128xf32>
    %250 = arith.mulf %207, %210 : vector<1x16x128xf32>
    %c1_i32_105 = arith.constant 1 : i32
    %251 = tpu.dynamic_rotate %250 by %c1_i32_105 dim 1 : vector<1x16x128xf32>, i32 -> vector<1x16x128xf32>
    %c15_i32_106 = arith.constant 15 : i32
    %252 = tpu.dynamic_rotate %250 by %c15_i32_106 dim 1 : vector<1x16x128xf32>, i32 -> vector<1x16x128xf32>
    %253 = arith.addf %251, %250 : vector<1x16x128xf32>
    %254 = arith.addf %253, %252 : vector<1x16x128xf32>
    %255 = arith.subf %252, %251 : vector<1x16x128xf32>
    %256 = arith.mulf %255, %10 : vector<1x16x128xf32>
    %257 = arith.addf %254, %256 : vector<1x16x128xf32>
    %c1_i32_107 = arith.constant 1 : i32
    %258 = tpu.dynamic_rotate %257 by %c1_i32_107 dim 2 : vector<1x16x128xf32>, i32 -> vector<1x16x128xf32>
    %c127_i32_108 = arith.constant 127 : i32
    %259 = tpu.dynamic_rotate %257 by %c127_i32_108 dim 2 : vector<1x16x128xf32>, i32 -> vector<1x16x128xf32>
    %260 = arith.addf %258, %257 : vector<1x16x128xf32>
    %261 = arith.addf %260, %259 : vector<1x16x128xf32>
    %262 = arith.subf %259, %258 : vector<1x16x128xf32>
    %263 = arith.mulf %262, %19 : vector<1x16x128xf32>
    %264 = arith.addf %261, %263 : vector<1x16x128xf32>
    %cst_109 = arith.constant 9.000000e+00 : f32
    %265 = vector.broadcast %cst_109 : f32 to vector<1x16x128xf32>
    %266 = arith.mulf %265, %264 : vector<1x16x128xf32>
    %267 = arith.subf %266, %231 : vector<1x16x128xf32>
    %cst_110 = arith.constant 2.000000e+00 : f32
    %268 = vector.broadcast %cst_110 : f32 to vector<1x16x128xf32>
    %269 = arith.mulf %268, %267 : vector<1x16x128xf32>
    %cst_111 = arith.constant 7.290000e-02 : f32
    %270 = vector.broadcast %cst_111 : f32 to vector<1x16x128xf32>
    %271 = arith.addf %269, %270 : vector<1x16x128xf32>
    %c2_112 = arith.constant 2 : index
    %c0_113 = arith.constant 0 : index
    %c0_114 = arith.constant 0 : index
    %c0_115 = arith.constant 0 : index
    %272 = vector.load %arg8[%c2_112, %c0_113, %c0_114, %c0_115] : memref<3x1x16x128xf32, #tpu.memory_space<vmem>>, vector<1x1x16x128xf32>
    %273 = vector.shape_cast %272 : vector<1x1x16x128xf32> to vector<1x16x128xf32>
    %274 = arith.addf %249, %273 : vector<1x16x128xf32>
    %cst_116 = arith.constant 2.000000e+00 : f32
    %275 = vector.broadcast %cst_116 : f32 to vector<1x16x128xf32>
    %276 = arith.mulf %275, %231 : vector<1x16x128xf32>
    %cst_117 = arith.constant 8.100000e-03 : f32
    %277 = vector.broadcast %cst_117 : f32 to vector<1x16x128xf32>
    %278 = arith.addf %276, %277 : vector<1x16x128xf32>
    %279 = arith.mulf %278, %271 : vector<1x16x128xf32>
    %c2_118 = arith.constant 2 : index
    %c0_119 = arith.constant 0 : index
    %c0_120 = arith.constant 0 : index
    %c0_121 = arith.constant 0 : index
    %280 = vector.load %arg7[%c2_118, %c0_119, %c0_120, %c0_121] : memref<3x1x16x128xf32, #tpu.memory_space<vmem>>, vector<1x1x16x128xf32>
    %281 = vector.shape_cast %280 : vector<1x1x16x128xf32> to vector<1x16x128xf32>
    %282 = arith.addf %228, %281 : vector<1x16x128xf32>
    %283 = arith.mulf %282, %274 : vector<1x16x128xf32>
    %284 = tpu.reciprocal %283 {approx = true} : vector<1x16x128xf32> -> vector<1x16x128xf32>
    %285 = arith.mulf %279, %284 : vector<1x16x128xf32>
    %cst_122 = arith.constant 1.000000e+00 : f32
    %286 = vector.broadcast %cst_122 : f32 to vector<1x16x128xf32>
    %287 = arith.subf %286, %285 : vector<1x16x128xf32>
    %cst_123 = arith.constant 5.000000e-01 : f32
    %288 = vector.broadcast %cst_123 : f32 to vector<1x16x128xf32>
    %289 = arith.mulf %287, %288 : vector<1x16x128xf32>
    %cst_124 = arith.constant 0.000000e+00 : f32
    %cst_125 = arith.constant 1.000000e+00 : f32
    %290 = vector.broadcast %cst_124 : f32 to vector<1x16x128xf32>
    %291 = arith.maximumf %290, %289 : vector<1x16x128xf32>
    %292 = vector.broadcast %cst_125 : f32 to vector<1x16x128xf32>
    %293 = arith.minimumf %292, %291 : vector<1x16x128xf32>
    %294 = arith.addf %204, %293 : vector<1x16x128xf32>
    %cst_126 = arith.constant 0.283333331 : f32
    %295 = vector.broadcast %cst_126 : f32 to vector<1x16x128xf32>
    %296 = arith.mulf %295, %294 : vector<1x16x128xf32>
    %cst_127 = arith.constant 5.000000e-02 : f32
    %297 = vector.broadcast %cst_127 : f32 to vector<1x16x128xf32>
    %298 = arith.mulf %297, %213 : vector<1x16x128xf32>
    %299 = arith.addf %296, %298 : vector<1x16x128xf32>
    %c0_i32_128 = arith.constant 0 : i32
    %300 = arith.cmpi eq, %arg1, %c0_i32_128 : i32
    %301 = arith.extui %300 : i1 to i32
    %c0_i32_129 = arith.constant 0 : i32
    %302 = arith.cmpi ne, %301, %c0_i32_129 : i32
    scf.if %302 {
      %c0_133 = arith.constant 0 : index
      %c0_134 = arith.constant 0 : index
      %c0_135 = arith.constant 0 : index
      %309 = vector.load %arg5[%c0_133, %c0_134, %c0_135] : memref<1x16x128xf32, #tpu.memory_space<vmem>>, vector<1x16x128xf32>
      tpu.vector_store %arg5[%c0_133, %c0_134, %c0_135], %299 {strides = array<i32>} : memref<1x16x128xf32, #tpu.memory_space<vmem>>, vector<1x16x128xf32>,
    } else {
    }
    %c0_i32_130 = arith.constant 0 : i32
    %303 = arith.cmpi sgt, %arg1, %c0_i32_130 : i32
    %304 = arith.extui %303 : i1 to i32
    %c0_i32_131 = arith.constant 0 : i32
    %305 = arith.cmpi ne, %304, %c0_i32_131 : i32
    scf.if %305 {
      %c0_133 = arith.constant 0 : index
      %c0_134 = arith.constant 0 : index
      %c0_135 = arith.constant 0 : index
      %309 = vector.load %arg5[%c0_133, %c0_134, %c0_135] : memref<1x16x128xf32, #tpu.memory_space<vmem>>, vector<1x16x128xf32>
      %310 = arith.minimumf %309, %299 : vector<1x16x128xf32>
      %c0_136 = arith.constant 0 : index
      %c0_137 = arith.constant 0 : index
      %c0_138 = arith.constant 0 : index
      %311 = vector.load %arg5[%c0_136, %c0_137, %c0_138] : memref<1x16x128xf32, #tpu.memory_space<vmem>>, vector<1x16x128xf32>
      tpu.vector_store %arg5[%c0_136, %c0_137, %c0_138], %310 {strides = array<i32>} : memref<1x16x128xf32, #tpu.memory_space<vmem>>, vector<1x16x128xf32>,
    } else {
    }
    %c3_i32 = arith.constant 3 : i32
    %306 = arith.cmpi eq, %arg1, %c3_i32 : i32
    %307 = arith.extui %306 : i1 to i32
    %c0_i32_132 = arith.constant 0 : i32
    %308 = arith.cmpi ne, %307, %c0_i32_132 : i32
    scf.if %308 {
      %c0_133 = arith.constant 0 : index
      %c0_134 = arith.constant 0 : index
      %c0_135 = arith.constant 0 : index
      %309 = vector.load %arg5[%c0_133, %c0_134, %c0_135] : memref<1x16x128xf32, #tpu.memory_space<vmem>>, vector<1x16x128xf32>
      %310 = vector.shape_cast %309 : vector<1x16x128xf32> to vector<1x1x16x128xf32>
      %cst_136 = arith.constant dense<0.000000e+00> : vector<1xf32>
      %311 = vector.multi_reduction <add>, %310, %cst_136 [1, 2, 3] : vector<1x1x16x128xf32> to vector<1xf32>
      %312 = vector.shape_cast %311 : vector<1xf32> to vector<1x1x1x1xf32>
      %313 = vector.extract %312[0, 0, 0, 0] : f32 from vector<1x1x1x1xf32>
      %314 = vector.broadcast %313 : f32 to vector<1x8x128xf32>
      %c0_137 = arith.constant 0 : index
      %c0_138 = arith.constant 0 : index
      %c0_139 = arith.constant 0 : index
      %315 = vector.load %arg4[%c0_137, %c0_138, %c0_139] : memref<1x8x128xf32, #tpu.memory_space<vmem>>, vector<1x8x128xf32>
      tpu.vector_store %arg4[%c0_137, %c0_138, %c0_139], %314 {strides = array<i32>} : memref<1x8x128xf32, #tpu.memory_space<vmem>>, vector<1x8x128xf32>,
    } else {
    }
    return
  }
  func.func @transform_0(%arg0: i32, %arg1: i32) -> (i32, i32, i32, i32) {
    %c0_i32 = arith.constant 0 : i32
    %c0_i32_0 = arith.constant 0 : i32
    %c0_i32_1 = arith.constant 0 : i32
    return %arg1, %arg0, %c0_i32, %c0_i32_0 : i32, i32, i32, i32
  }
  func.func @transform_1(%arg0: i32, %arg1: i32) -> (i32, i32, i32, i32) {
    %c0_i32 = arith.constant 0 : i32
    %c0_i32_0 = arith.constant 0 : i32
    %c0_i32_1 = arith.constant 0 : i32
    %c0_i32_2 = arith.constant 0 : i32
    return %c0_i32, %arg0, %c0_i32_0, %c0_i32_1 : i32, i32, i32, i32
  }
  func.func @transform_2(%arg0: i32, %arg1: i32) -> (i32, i32, i32) {
    %c0_i32 = arith.constant 0 : i32
    %c0_i32_0 = arith.constant 0 : i32
    %c0_i32_1 = arith.constant 0 : i32
    return %arg0, %c0_i32, %c0_i32_0 : i32, i32, i32
  }
}

</mosaic_0001>

<llo_original>
// kernel: tpu_custom_call.1
$region0: #{tpu_custom_call.1}
  #allocation0 [shape = 'u32[]', space=smem, size = 0x4, offset = 0x4, fixed_abs, tag = 'smem constant byte address 0x4 - core index']
  #allocation1 [shape = 'u32[144,128]{1,0:T(1,128)}', space=vmem, size = 0x12000, scoped, tag = 'internal scratch']
  #allocation2 [shape = 'f32[1,16,128]{2,1,0:T(8,128)}', space=vmem, size = 0x2000, scoped, tag = 'scratch operand']
  #allocation3 [shape = 'f32[3,1,16,128]{3,2,1,0:T(8,128)}', space=vmem, size = 0x6000, scoped, tag = 'scratch operand']
  #allocation4 [shape = 'f32[3,1,16,128]{3,2,1,0:T(8,128)}', space=vmem, size = 0x6000, scoped, tag = 'scratch operand']
  #allocation5 [shape = 'f32[3,1,16,128]{3,2,1,0:T(8,128)}', space=vmem, size = 0x6000, scoped, tag = 'scratch operand']
  #allocation12 [shape = 's32[]', space=sflag, size = 0x4, offset = 0, fixed_abs, tag = 'sflag constant byte address 0x0 - dummy sync flag']
  #allocation14 [shape = 's32[]', space=sflag, size = 0x4, offset = 0, fixed_abs, tag = 'sflag constant byte address 0x0 - dummy sync flag']
  %s0 = inlined_call_operand.hbm [shape: bf16[12,2,16,128], index: 0, kind: input, shape index: {}]
  %s1 = inlined_call_operand.hbm [shape: bf16[3,2,16,128], index: 1, kind: input, shape index: {}]
  %s2 = inlined_call_operand.hbm [shape: f32[2,8,128], index: 2, kind: output, shape index: {}]
  %s3 = sld [smem:[#allocation0]]
  $region65: #{tpu_custom_call.1} parent=0
    _
  %s5 = ssub.s32 1, %s3
  %s6 = scalar_select 0, %s5, %s3
  $region1: #{tpu_custom_call.1} parent=0
    #allocation6 [shape = 'u8[24576]{0}', space=vmem, size = 0x6000, scoped, tag = 'input window, operand 0']
    #allocation7 [shape = 's32[2]{0}', space=sflag, size = 0x8, scoped, tag = 'scoped memory for tpu_custom_call.1']
    #allocation8 [shape = 's32[2]{0}', space=sflag, size = 0x8, scoped, tag = 'scoped memory for tpu_custom_call.1']
    #allocation9 [shape = 'u8[24576]{0}', space=vmem, size = 0x6000, scoped, tag = 'input window, operand 1']
    #allocation10 [shape = 's32[2]{0}', space=sflag, size = 0x8, scoped, tag = 'scoped memory for tpu_custom_call.1']
    #allocation11 [shape = 'u8[8192]{0}', space=vmem, size = 0x2000, scoped, tag = 'output window, operand 0']
    %7 = vsyncpa [#allocation7], 0
    %s8 = scalar_lea.sflag [#allocation7], 1
    %9 = vsyncpa %s8, 0
    %10 = vsyncpa [#allocation10], 0
    %s11 = scalar_lea.sflag [#allocation10], 1
    %12 = vsyncpa %s11, 0
    %13 = vsyncpa [#allocation8], 0
    %s14 = scalar_lea.sflag [#allocation8], 1
    %15 = vsyncpa %s14, 0
    loop: start=0, step=1, limit=10
    $region2: #{tpu_custom_call.1} parent=1 // loop_pre_header
      _
    $region3: #{tpu_custom_call.1} parent=1 // loop_header
      %s17 = sphi 0, %s21
      %p18 = scmp.ge.s32.totalorder %s17, 10
      %s24 = sphi 0, %s36
      %s25 = sphi 0, %s32
      %s26 = sphi 0, %s24
      %s27 = sphi 0, %s25
      %s28 = sphi 0, %s26
      %s29 = sphi 0, %s27
      %s41 = sphi 0, %s43
      %s44 = sphi 0, %s41
      %s45 = sphi 0, %s44
      %s61 = sphi 0, %s45
      %s67 = sphi 0, %s69
      %s70 = sphi 0, %s67
      %s71 = sphi 0, %s70
      %s87 = sphi 0, %s71
      %s93 = sphi 0, %s95
      %s96 = sphi 0, %s93
      %s97 = sphi 0, %s96
      %s113 = sphi 0, %s97
    $region4: #{tpu_custom_call.1} parent=1 // loop_header_branch
      %20 = sbr.rel (%p18) target = $region8
    $region5: #{tpu_custom_call.1} parent=1 // loop_body
      %s22 = ssub.s32 %s17, 1
      %s23 = ssub.s32 %s17, 2
      %s30 = sadd.s32 1, %s25
      %p31 = scmp.ge.s32.totalorder %s30, 4
      %s32 = scalar_select %p31, 0, %s30
      %s33 = sadd.s32 1, %s24
      %s34 = scalar_select %p31, %s33, %s24
      %p35 = scmp.ge.s32.totalorder %s34, 2
      %s36 = scalar_select %p35, 0, %s34
      %s37 = ssub.s32 %s25, %s32
      %s38 = ssub.s32 %s24, %s36
      %s39 = sor.u32 %s37, %s38
      %p40 = scmp.eq.s32.totalorder %s39, 0
      %s42 = sadd.s32 %s41, 1
      %s43 = scalar_select %p40, %s41, %s42
      %p46 = pneg %p40
      %p47 = scmp.eq.s32.totalorder %s17, 7
      %p48 = por %p46, %p47
      %p49 = scmp.ne.s32.totalorder %s41, %s44
      %p50 = scmp.eq.s32.totalorder %s17, 0
      %p51 = por %p49, %p50
      %p52 = scmp.ne.s32.totalorder %s41, %s44
      %p53 = scmp.eq.s32.totalorder %s22, 7
      %p54 = por %p52, %p53
      %p55 = scmp.ne.s32.totalorder %s44, %s45
      %p56 = scmp.eq.s32.totalorder %s22, 0
      %p57 = por %p55, %p56
      %p58 = scmp.ne.s32.totalorder %s44, %s45
      %p59 = scmp.eq.s32.totalorder %s23, 7
      %p60 = por %p58, %p59
      %p62 = scmp.ne.s32.totalorder %s45, %s61
      %p63 = scmp.eq.s32.totalorder %s23, 0
      %p64 = por %p62, %p63
      %s65 = ssub.s32 %s24, %s36
      %p66 = scmp.eq.s32.totalorder %s65, 0
      %s68 = sadd.s32 %s67, 1
      %s69 = scalar_select %p66, %s67, %s68
      %p72 = pneg %p66
      %p73 = scmp.eq.s32.totalorder %s17, 7
      %p74 = por %p72, %p73
      %p75 = scmp.ne.s32.totalorder %s67, %s70
      %p76 = scmp.eq.s32.totalorder %s17, 0
      %p77 = por %p75, %p76
      %p78 = scmp.ne.s32.totalorder %s67, %s70
      %p79 = scmp.eq.s32.totalorder %s22, 7
      %p80 = por %p78, %p79
      %p81 = scmp.ne.s32.totalorder %s70, %s71
      %p82 = scmp.eq.s32.totalorder %s22, 0
      %p83 = por %p81, %p82
      %p84 = scmp.ne.s32.totalorder %s70, %s71
      %p85 = scmp.eq.s32.totalorder %s23, 7
      %p86 = por %p84, %p85
      %p88 = scmp.ne.s32.totalorder %s71, %s87
      %p89 = scmp.eq.s32.totalorder %s23, 0
      %p90 = por %p88, %p89
      %s91 = ssub.s32 %s24, %s36
      %p92 = scmp.eq.s32.totalorder %s91, 0
      %s94 = sadd.s32 %s93, 1
      %s95 = scalar_select %p92, %s93, %s94
      %p98 = pneg %p92
      %p99 = scmp.eq.s32.totalorder %s17, 7
      %p100 = por %p98, %p99
      %p101 = scmp.ne.s32.totalorder %s93, %s96
      %p102 = scmp.eq.s32.totalorder %s17, 0
      %p103 = por %p101, %p102
      %p104 = scmp.ne.s32.totalorder %s93, %s96
      %p105 = scmp.eq.s32.totalorder %s22, 7
      %p106 = por %p104, %p105
      %p107 = scmp.ne.s32.totalorder %s96, %s97
      %p108 = scmp.eq.s32.totalorder %s22, 0
      %p109 = por %p107, %p108
      %p110 = scmp.ne.s32.totalorder %s96, %s97
      %p111 = scmp.eq.s32.totalorder %s23, 7
      %p112 = por %p110, %p111
      %p114 = scmp.ne.s32.totalorder %s97, %s113
      %p115 = scmp.eq.s32.totalorder %s23, 0
      %p116 = por %p114, %p115
      %p117 = scmp.le.s32.totalorder 1, %s17
      %p118 = scmp.lt.s32.totalorder %s17, 9
      %p119 = pnand %p117, %p118
      %p120 = pneg %p119
      // Predicated region
      $region9: #{tpu_custom_call.1} parent=5 // pred_check
        _
      $region10: #{tpu_custom_call.1} parent=5 // pred_check_branch
        %122 = sbr.rel (%p119) target = $region12
      $region11: #{tpu_custom_call.1} parent=5 // pred_region
        %s123 = ssub.s32 %s17, 1
      $region12: #{tpu_custom_call.1} parent=5 // pred_fallthru
        _
      %p124 = scmp.lt.s32.totalorder %s17, 8
      // Predicated region
      $region13: #{tpu_custom_call.1} parent=5 // pred_check
        %p125 = pneg %p124
      $region14: #{tpu_custom_call.1} parent=5 // pred_check_branch
        %127 = sbr.rel (%p125) target = $region16
      $region15: #{tpu_custom_call.1} parent=5 // pred_region
        // Predicated region
        $region17: #{tpu_custom_call.1} parent=15 // pred_check
          %p128 = pneg %p51
        $region18: #{tpu_custom_call.1} parent=15 // pred_check_branch
          %130 = sbr.rel (%p128) target = $region20
        $region19: #{tpu_custom_call.1} parent=15 // pred_region
          #allocation13 [shape = 'u32[6]{0}', space=smem, size = 0x18, scoped, tag = 'DMA stride descriptor']
          %s131 = sand.u32 %s41, 1
          %s132 = scalar_lea.sflag [#allocation7], %s131
          %s133 = sand.u32 %s41, 1
          %s134 = smul.addr %s133, 24
          %s135 = scalar_lea.vmem [#allocation6], %s134
          %s136 = smul.u32 3, %s25
          %s138 = ssub.s32 384, 384
          %139 = vsyncadd %s132, %s138
          %s140 = smul.addr %s24, 2
          %s141 = smul.addr %s136, 4
          %s142 = sadd.s32 %s140, %s141
          %s143 = smul.addr %s142, 64
          %s144 = scalar_lea.hbm %s0, %s143
          %s146 = sshll.u32 1, 14
          %s147 = sxor.u32 4294967295, %s146
          %s149 = sld [smem:[#allocation0]]
          %s150 = sadd.s32 2, %s149
          %s152 = sshll.u32 7, 26
          %s153 = sxor.u32 4294967295, %s152
          %s154 = sand.u32 0, %s153
          %s155 = sshll.u32 %s150, 26
          %s156 = sor.u32 %s154, %s155
          %s157 = sshll.u32 %s135, 4
          %s158 = int_to_ptr.vmem [resolvable:$true] %s157
          %164 = sst [smem:[#allocation13]] 256
          %s165 = scalar_lea.smem [#allocation13], 1
          %166 = sst [smem:[%s165]] 128
          %s167 = scalar_lea.smem [#allocation13], 2
          %168 = sst [smem:[%s167]] 2
          %s169 = scalar_lea.smem [#allocation13], 3
          %170 = sst [smem:[%s169]] 64
          %s171 = scalar_lea.smem [#allocation13], 4
          %172 = sst [smem:[%s171]] 64
          %s173 = scalar_lea.smem [#allocation13], 5
          %174 = sst [smem:[%s173]] 4
          %176 = dma.general %s144, 384, %s158, %s132, [#allocation12], [#allocation13], %s156, 0
        $region20: #{tpu_custom_call.1} parent=15 // pred_fallthru
          _
        // Predicated region
        $region21: #{tpu_custom_call.1} parent=15 // pred_check
          %p177 = pneg %p77
        $region22: #{tpu_custom_call.1} parent=15 // pred_check_branch
          %179 = sbr.rel (%p177) target = $region24
        $region23: #{tpu_custom_call.1} parent=15 // pred_region
          #allocation15 [shape = 'u32[6]{0}', space=smem, size = 0x18, scoped, tag = 'DMA stride descriptor']
          %s180 = sand.u32 %s67, 1
          %s181 = scalar_lea.sflag [#allocation10], %s180
          %s182 = sand.u32 %s67, 1
          %s183 = smul.addr %s182, 24
          %s184 = scalar_lea.vmem [#allocation9], %s183
          %s186 = ssub.s32 384, 384
          %187 = vsyncadd %s181, %s186
          %s188 = smul.addr %s24, 2
          %s189 = smul.addr %s188, 64
          %s190 = scalar_lea.hbm %s1, %s189
          %s192 = sshll.u32 1, 14
          %s193 = sxor.u32 4294967295, %s192
          %s195 = sld [smem:[#allocation0]]
          %s196 = sadd.s32 2, %s195
          %s198 = sshll.u32 7, 26
          %s199 = sxor.u32 4294967295, %s198
          %s200 = sand.u32 0, %s199
          %s201 = sshll.u32 %s196, 26
          %s202 = sor.u32 %s200, %s201
          %s203 = sshll.u32 %s184, 4
          %s204 = int_to_ptr.vmem [resolvable:$true] %s203
          %210 = sst [smem:[#allocation15]] 256
          %s211 = scalar_lea.smem [#allocation15], 1
          %212 = sst [smem:[%s211]] 128
          %s213 = scalar_lea.smem [#allocation15], 2
          %214 = sst [smem:[%s213]] 2
          %s215 = scalar_lea.smem [#allocation15], 3
          %216 = sst [smem:[%s215]] 64
          %s217 = scalar_lea.smem [#allocation15], 4
          %218 = sst [smem:[%s217]] 64
          %s219 = scalar_lea.smem [#allocation15], 5
          %220 = sst [smem:[%s219]] 4
          %222 = dma.general %s190, 384, %s204, %s181, [#allocation14], [#allocation15], %s202, 0
        $region24: #{tpu_custom_call.1} parent=15 // pred_fallthru
          _
      $region16: #{tpu_custom_call.1} parent=5 // pred_fallthru
        _
      %p223 = scmp.le.s32.totalorder 1, %s17
      %p224 = scmp.lt.s32.totalorder %s17, 9
      %p225 = pnand %p223, %p224
      %p226 = pneg %p225
      // Predicated region
      $region25: #{tpu_custom_call.1} parent=5 // pred_check
        _
      $region26: #{tpu_custom_call.1} parent=5 // pred_check_branch
        %228 = sbr.rel (%p225) target = $region28
      $region27: #{tpu_custom_call.1} parent=5 // pred_region
        %s229 = ssub.s32 %s17, 1
        %s230 = sand.u32 %s44, 1
        %s231 = scalar_lea.sflag [#allocation7], %s230
        %s232 = sand.u32 %s44, 1
        %s233 = smul.addr %s232, 24
        %s234 = scalar_lea.vmem [#allocation6], %s233
        // Predicated region
        $region29: #{tpu_custom_call.1} parent=27 // pred_check
          %p235 = pneg %p57
        $region30: #{tpu_custom_call.1} parent=27 // pred_check_branch
          %237 = sbr.rel (%p235) target = $region32
        $region31: #{tpu_custom_call.1} parent=27 // pred_region
          %238 = dma.done %s231, 384
        $region32: #{tpu_custom_call.1} parent=27 // pred_fallthru
          _
        %s239 = sand.u32 %s70, 1
        %s240 = scalar_lea.sflag [#allocation10], %s239
        %s241 = sand.u32 %s70, 1
        %s242 = smul.addr %s241, 24
        %s243 = scalar_lea.vmem [#allocation9], %s242
        // Predicated region
        $region33: #{tpu_custom_call.1} parent=27 // pred_check
          %p244 = pneg %p83
        $region34: #{tpu_custom_call.1} parent=27 // pred_check_branch
          %246 = sbr.rel (%p244) target = $region36
        $region35: #{tpu_custom_call.1} parent=27 // pred_region
          %247 = dma.done %s240, 384
        $region36: #{tpu_custom_call.1} parent=27 // pred_fallthru
          _
        %s248 = sand.u32 %s44, 1
        %s249 = scalar_lea.sflag [#allocation7], %s248
        %s250 = sand.u32 %s44, 1
        %s251 = smul.addr %s250, 24
        %s252 = scalar_lea.vmem [#allocation6], %s251
        %p253 = pneg %p57
        %p254 = pneg %p54
        %s255 = sand.u32 %s70, 1
        %s256 = scalar_lea.sflag [#allocation10], %s255
        %s257 = sand.u32 %s70, 1
        %s258 = smul.addr %s257, 24
        %s259 = scalar_lea.vmem [#allocation9], %s258
        %p260 = pneg %p83
        %p261 = pneg %p80
        %p262 = pneg %p109
        %p263 = pneg %p106
        %s264 = sand.u32 %s96, 1
        %s265 = scalar_lea.sflag [#allocation8], %s264
        %s266 = sand.u32 %s96, 1
        %s267 = smul.addr %s266, 8
        %s268 = scalar_lea.vmem [#allocation11], %s267
        %s269 = smul.u32 3, %s27
        %v270 = vlaneseq
        %v271 = vshrl.u32 %v270, 7
        %v272 = vadd.s32 %v271, 8
        %v273 = vlaneseq
        %v274 = vand.u32 %v273, 127
        %vm275 = vcmp.eq.s32.totalorder %v271, 0
        %vm276 = vcmp.eq.s32.totalorder %v272, 0
        %v277 = vsel %vm275, 1, 0
        %v278 = vsel %vm276, 1, 0
        %v279 = vcvt.s32.f32 %v277
        %v280 = vcvt.s32.f32 %v278
        %vm281 = vcmp.eq.s32.totalorder %v271, 15
        %vm282 = vcmp.eq.s32.totalorder %v272, 15
        %v283 = vsel %vm281, 1, 0
        %v284 = vsel %vm282, 1, 0
        %v285 = vcvt.s32.f32 %v283
        %v286 = vcvt.s32.f32 %v284
        %v287 = vsub.f32 %v279, %v285
        %v288 = vsub.f32 %v280, %v286
        %vm289 = vcmp.eq.s32.totalorder %v274, 0
        %v290 = vsel %vm289, 1, 0
        %v291 = vcvt.s32.f32 %v290
        %vm292 = vcmp.eq.s32.totalorder %v274, 127
        %v293 = vsel %vm292, 1, 0
        %v294 = vcvt.s32.f32 %v293
        %v295 = vsub.f32 %v291, %v294
        %p296 = scmp.eq.s32.totalorder %s27, 0
        // Predicated region
        $region37: #{tpu_custom_call.1} parent=27 // pred_check
          %p297 = pneg %p296
        $region38: #{tpu_custom_call.1} parent=27 // pred_check_branch
          %299 = sbr.rel (%p297) target = $region40
        $region39: #{tpu_custom_call.1} parent=27 // pred_region
          %v300 = vld [vmem:[%s243] sm:$0xf]
          %v301 = vld [vmem:[%s243 + $0x4] sm:$0xf]
          %v302 = vunpack.c.l.bf16 %v300
          %v303 = vunpack.c.l.bf16 %v301
          %v304 = vrot.slane %v302, 7
          %v305 = vrot.slane %v303, 7
          %vm306 = vcmp.lt.s32.totalorder %v271, 1
          %v307 = vsel %vm306, %v304, %v305
          %v308 = vsel %vm306, %v305, %v304
          %v309 = vrot.slane %v302, 1
          %v310 = vrot.slane %v303, 1
          %vm311 = vcmp.lt.s32.totalorder %v271, 7
          %v312 = vsel %vm311, %v309, %v310
          %v313 = vsel %vm311, %v310, %v309
          %v314 = vadd.f32 %v308, %v302
          %v315 = vadd.f32 %v307, %v303
          %v316 = vadd.f32 %v314, %v312
          %v317 = vadd.f32 %v315, %v313
          %v318 = vsub.f32 %v312, %v308
          %v319 = vsub.f32 %v313, %v307
          %v320 = vmul.f32 %v318, %v287
          %v321 = vmul.f32 %v319, %v288
          %v322 = vadd.f32 %v316, %v320
          %v323 = vadd.f32 %v317, %v321
          %324 = vrot.lane.b32.xlu0 %v322, 1
          %v325 = vpop.permute.xlu0 %324
          %326 = vrot.lane.b32.xlu0 %v323, 1
          %v327 = vpop.permute.xlu0 %326
          %328 = vrot.lane.b32.xlu0 %v322, 127
          %v329 = vpop.permute.xlu0 %328
          %330 = vrot.lane.b32.xlu0 %v323, 127
          %v331 = vpop.permute.xlu0 %330
          %v332 = vadd.f32 %v325, %v322
          %v333 = vadd.f32 %v327, %v323
          %v334 = vadd.f32 %v332, %v329
          %v335 = vadd.f32 %v333, %v331
          %v336 = vsub.f32 %v329, %v325
          %v337 = vsub.f32 %v331, %v327
          %v338 = vmul.f32 %v336, %v295
          %v339 = vmul.f32 %v337, %v295
          %v340 = vadd.f32 %v334, %v338
          %v341 = vadd.f32 %v335, %v339
          %v342 = vmul.f32 %v340, %v340
          %v343 = vmul.f32 %v341, %v341
          %344 = vst [vmem:[#allocation3] sm:$0xff] %v340
          %345 = vst [vmem:[#allocation3 + $0x8] sm:$0xff] %v341
          %v346 = vadd.f32 %v342, 0.0081
          %v347 = vadd.f32 %v343, 0.0081
          %348 = vst [vmem:[#allocation4] sm:$0xff] %v346
          %349 = vst [vmem:[#allocation4 + $0x8] sm:$0xff] %v347
          %v350 = vmul.f32 %v302, %v302
          %v351 = vmul.f32 %v303, %v303
          %v352 = vrot.slane %v350, 7
          %v353 = vrot.slane %v351, 7
          %v354 = vsel %vm306, %v352, %v353
          %v355 = vsel %vm306, %v353, %v352
          %v356 = vrot.slane %v350, 1
          %v357 = vrot.slane %v351, 1
          %v358 = vsel %vm311, %v356, %v357
          %v359 = vsel %vm311, %v357, %v356
          %v360 = vadd.f32 %v355, %v350
          %v361 = vadd.f32 %v354, %v351
          %v362 = vadd.f32 %v360, %v358
          %v363 = vadd.f32 %v361, %v359
          %v364 = vsub.f32 %v358, %v355
          %v365 = vsub.f32 %v359, %v354
          %v366 = vmul.f32 %v364, %v287
          %v367 = vmul.f32 %v365, %v288
          %v368 = vadd.f32 %v362, %v366
          %v369 = vadd.f32 %v363, %v367
          %370 = vrot.lane.b32.xlu0 %v368, 1
          %v371 = vpop.permute.xlu0 %370
          %372 = vrot.lane.b32.xlu0 %v369, 1
          %v373 = vpop.permute.xlu0 %372
          %374 = vrot.lane.b32.xlu0 %v368, 127
          %v375 = vpop.permute.xlu0 %374
          %376 = vrot.lane.b32.xlu0 %v369, 127
          %v377 = vpop.permute.xlu0 %376
          %v378 = vadd.f32 %v371, %v368
          %v379 = vadd.f32 %v373, %v369
          %v380 = vadd.f32 %v378, %v375
          %v381 = vadd.f32 %v379, %v377
          %v382 = vsub.f32 %v375, %v371
          %v383 = vsub.f32 %v377, %v373
          %v384 = vmul.f32 %v382, %v295
          %v385 = vmul.f32 %v383, %v295
          %v386 = vadd.f32 %v380, %v384
          %v387 = vadd.f32 %v381, %v385
          %v388 = vmul.f32 %v386, 9.0
          %v389 = vmul.f32 %v387, 9.0
          %v390 = vsub.f32 %v388, %v342
          %v391 = vsub.f32 %v389, %v343
          %v392 = vadd.f32 %v390, 0.0729
          %v393 = vadd.f32 %v391, 0.0729
          %394 = vst [vmem:[#allocation5] sm:$0xff] %v392
          %395 = vst [vmem:[#allocation5 + $0x8] sm:$0xff] %v393
          %s396 = scalar_lea.vmem %s243, 8 [#allocation9]
          %v397 = vld [vmem:[%s396] sm:$0xf]
          %v398 = vld [vmem:[%s396 + $0x4] sm:$0xf]
          %v399 = vunpack.c.l.bf16 %v397
          %v400 = vunpack.c.l.bf16 %v398
          %v401 = vrot.slane %v399, 7
          %v402 = vrot.slane %v400, 7
          %v403 = vsel %vm306, %v401, %v402
          %v404 = vsel %vm306, %v402, %v401
          %v405 = vrot.slane %v399, 1
          %v406 = vrot.slane %v400, 1
          %v407 = vsel %vm311, %v405, %v406
          %v408 = vsel %vm311, %v406, %v405
          %v409 = vadd.f32 %v404, %v399
          %v410 = vadd.f32 %v403, %v400
          %v411 = vadd.f32 %v409, %v407
          %v412 = vadd.f32 %v410, %v408
          %v413 = vsub.f32 %v407, %v404
          %v414 = vsub.f32 %v408, %v403
          %v415 = vmul.f32 %v413, %v287
          %v416 = vmul.f32 %v414, %v288
          %v417 = vadd.f32 %v411, %v415
          %v418 = vadd.f32 %v412, %v416
          %419 = vrot.lane.b32.xlu0 %v417, 1
          %v420 = vpop.permute.xlu0 %419
          %421 = vrot.lane.b32.xlu0 %v418, 1
          %v422 = vpop.permute.xlu0 %421
          %423 = vrot.lane.b32.xlu0 %v417, 127
          %v424 = vpop.permute.xlu0 %423
          %425 = vrot.lane.b32.xlu0 %v418, 127
          %v426 = vpop.permute.xlu0 %425
          %v427 = vadd.f32 %v420, %v417
          %v428 = vadd.f32 %v422, %v418
          %v429 = vadd.f32 %v427, %v424
          %v430 = vadd.f32 %v428, %v426
          %v431 = vsub.f32 %v424, %v420
          %v432 = vsub.f32 %v426, %v422
          %v433 = vmul.f32 %v431, %v295
          %v434 = vmul.f32 %v432, %v295
          %v435 = vadd.f32 %v429, %v433
          %v436 = vadd.f32 %v430, %v434
          %v437 = vmul.f32 %v435, %v435
          %v438 = vmul.f32 %v436, %v436
          %s439 = scalar_lea.vmem [#allocation3], 16
          %440 = vst [vmem:[%s439] sm:$0xff] %v435
          %441 = vst [vmem:[%s439 + $0x8] sm:$0xff] %v436
          %v442 = vadd.f32 %v437, 0.0081
          %v443 = vadd.f32 %v438, 0.0081
          %s444 = scalar_lea.vmem [#allocation4], 16
          %445 = vst [vmem:[%s444] sm:$0xff] %v442
          %446 = vst [vmem:[%s444 + $0x8] sm:$0xff] %v443
          %v447 = vmul.f32 %v399, %v399
          %v448 = vmul.f32 %v400, %v400
          %v449 = vrot.slane %v447, 7
          %v450 = vrot.slane %v448, 7
          %v451 = vsel %vm306, %v449, %v450
          %v452 = vsel %vm306, %v450, %v449
          %v453 = vrot.slane %v447, 1
          %v454 = vrot.slane %v448, 1
          %v455 = vsel %vm311, %v453, %v454
          %v456 = vsel %vm311, %v454, %v453
          %v457 = vadd.f32 %v452, %v447
          %v458 = vadd.f32 %v451, %v448
          %v459 = vadd.f32 %v457, %v455
          %v460 = vadd.f32 %v458, %v456
          %v461 = vsub.f32 %v455, %v452
          %v462 = vsub.f32 %v456, %v451
          %v463 = vmul.f32 %v461, %v287
          %v464 = vmul.f32 %v462, %v288
          %v465 = vadd.f32 %v459, %v463
          %v466 = vadd.f32 %v460, %v464
          %467 = vrot.lane.b32.xlu0 %v465, 1
          %v468 = vpop.permute.xlu0 %467
          %469 = vrot.lane.b32.xlu0 %v466, 1
          %v470 = vpop.permute.xlu0 %469
          %471 = vrot.lane.b32.xlu0 %v465, 127
          %v472 = vpop.permute.xlu0 %471
          %473 = vrot.lane.b32.xlu0 %v466, 127
          %v474 = vpop.permute.xlu0 %473
          %v475 = vadd.f32 %v468, %v465
          %v476 = vadd.f32 %v470, %v466
          %v477 = vadd.f32 %v475, %v472
          %v478 = vadd.f32 %v476, %v474
          %v479 = vsub.f32 %v472, %v468
          %v480 = vsub.f32 %v474, %v470
          %v481 = vmul.f32 %v479, %v295
          %v482 = vmul.f32 %v480, %v295
          %v483 = vadd.f32 %v477, %v481
          %v484 = vadd.f32 %v478, %v482
          %v485 = vmul.f32 %v483, 9.0
          %v486 = vmul.f32 %v484, 9.0
          %v487 = vsub.f32 %v485, %v437
          %v488 = vsub.f32 %v486, %v438
          %v489 = vadd.f32 %v487, 0.0729
          %v490 = vadd.f32 %v488, 0.0729
          %s491 = scalar_lea.vmem [#allocation5], 16
          %492 = vst [vmem:[%s491] sm:$0xff] %v489
          %493 = vst [vmem:[%s491 + $0x8] sm:$0xff] %v490
          %s494 = scalar_lea.vmem %s243, 16 [#allocation9]
          %v495 = vld [vmem:[%s494] sm:$0xf]
          %v496 = vld [vmem:[%s494 + $0x4] sm:$0xf]
          %v497 = vunpack.c.l.bf16 %v495
          %v498 = vunpack.c.l.bf16 %v496
          %v499 = vrot.slane %v497, 7
          %v500 = vrot.slane %v498, 7
          %v501 = vsel %vm306, %v499, %v500
          %v502 = vsel %vm306, %v500, %v499
          %v503 = vrot.slane %v497, 1
          %v504 = vrot.slane %v498, 1
          %v505 = vsel %vm311, %v503, %v504
          %v506 = vsel %vm311, %v504, %v503
          %v507 = vadd.f32 %v502, %v497
          %v508 = vadd.f32 %v501, %v498
          %v509 = vadd.f32 %v507, %v505
          %v510 = vadd.f32 %v508, %v506
          %v511 = vsub.f32 %v505, %v502
          %v512 = vsub.f32 %v506, %v501
          %v513 = vmul.f32 %v511, %v287
          %v514 = vmul.f32 %v512, %v288
          %v515 = vadd.f32 %v509, %v513
          %v516 = vadd.f32 %v510, %v514
          %517 = vrot.lane.b32.xlu0 %v515, 1
          %v518 = vpop.permute.xlu0 %517
          %519 = vrot.lane.b32.xlu0 %v516, 1
          %v520 = vpop.permute.xlu0 %519
          %521 = vrot.lane.b32.xlu0 %v515, 127
          %v522 = vpop.permute.xlu0 %521
          %523 = vrot.lane.b32.xlu0 %v516, 127
          %v524 = vpop.permute.xlu0 %523
          %v525 = vadd.f32 %v518, %v515
          %v526 = vadd.f32 %v520, %v516
          %v527 = vadd.f32 %v525, %v522
          %v528 = vadd.f32 %v526, %v524
          %v529 = vsub.f32 %v522, %v518
          %v530 = vsub.f32 %v524, %v520
          %v531 = vmul.f32 %v529, %v295
          %v532 = vmul.f32 %v530, %v295
          %v533 = vadd.f32 %v527, %v531
          %v534 = vadd.f32 %v528, %v532
          %v535 = vmul.f32 %v533, %v533
          %v536 = vmul.f32 %v534, %v534
          %s537 = scalar_lea.vmem [#allocation3], 32
          %538 = vst [vmem:[%s537] sm:$0xff] %v533
          %539 = vst [vmem:[%s537 + $0x8] sm:$0xff] %v534
          %v540 = vadd.f32 %v535, 0.0081
          %v541 = vadd.f32 %v536, 0.0081
          %s542 = scalar_lea.vmem [#allocation4], 32
          %543 = vst [vmem:[%s542] sm:$0xff] %v540
          %544 = vst [vmem:[%s542 + $0x8] sm:$0xff] %v541
          %v545 = vmul.f32 %v497, %v497
          %v546 = vmul.f32 %v498, %v498
          %v547 = vrot.slane %v545, 7
          %v548 = vrot.slane %v546, 7
          %v549 = vsel %vm306, %v547, %v548
          %v550 = vsel %vm306, %v548, %v547
          %v551 = vrot.slane %v545, 1
          %v552 = vrot.slane %v546, 1
          %v553 = vsel %vm311, %v551, %v552
          %v554 = vsel %vm311, %v552, %v551
          %v555 = vadd.f32 %v550, %v545
          %v556 = vadd.f32 %v549, %v546
          %v557 = vadd.f32 %v555, %v553
          %v558 = vadd.f32 %v556, %v554
          %v559 = vsub.f32 %v553, %v550
          %v560 = vsub.f32 %v554, %v549
          %v561 = vmul.f32 %v559, %v287
          %v562 = vmul.f32 %v560, %v288
          %v563 = vadd.f32 %v557, %v561
          %v564 = vadd.f32 %v558, %v562
          %565 = vrot.lane.b32.xlu0 %v563, 1
          %v566 = vpop.permute.xlu0 %565
          %567 = vrot.lane.b32.xlu0 %v564, 1
          %v568 = vpop.permute.xlu0 %567
          %569 = vrot.lane.b32.xlu0 %v563, 127
          %v570 = vpop.permute.xlu0 %569
          %571 = vrot.lane.b32.xlu0 %v564, 127
          %v572 = vpop.permute.xlu0 %571
          %v573 = vadd.f32 %v566, %v563
          %v574 = vadd.f32 %v568, %v564
          %v575 = vadd.f32 %v573, %v570
          %v576 = vadd.f32 %v574, %v572
          %v577 = vsub.f32 %v570, %v566
          %v578 = vsub.f32 %v572, %v568
          %v579 = vmul.f32 %v577, %v295
          %v580 = vmul.f32 %v578, %v295
          %v581 = vadd.f32 %v575, %v579
          %v582 = vadd.f32 %v576, %v580
          %v583 = vmul.f32 %v581, 9.0
          %v584 = vmul.f32 %v582, 9.0
          %v585 = vsub.f32 %v583, %v535
          %v586 = vsub.f32 %v584, %v536
          %v587 = vadd.f32 %v585, 0.0729
          %v588 = vadd.f32 %v586, 0.0729
          %s589 = scalar_lea.vmem [#allocation5], 32
          %590 = vst [vmem:[%s589] sm:$0xff] %v587
          %591 = vst [vmem:[%s589 + $0x8] sm:$0xff] %v588
        $region40: #{tpu_custom_call.1} parent=27 // pred_fallthru
          _
        %v592 = vld [vmem:[%s234] sm:$0xf]
        %v593 = vld [vmem:[%s234 + $0x4] sm:$0xf]
        %v594 = vunpack.c.l.bf16 %v592
        %v595 = vunpack.c.l.bf16 %v593
        %v596 = vld [vmem:[%s243] sm:$0xf]
        %v597 = vld [vmem:[%s243 + $0x4] sm:$0xf]
        %v598 = vunpack.c.l.bf16 %v596
        %v599 = vunpack.c.l.bf16 %v597
        %v600 = vsub.f32 %v594, %v598
        %v601 = vsub.f32 %v595, %v599
        %v602 = vand.u32 2147483647, %v600
        %v603 = vand.u32 2147483647, %v601
        %v604 = vadd.f32 %v602, 0.0
        %v605 = vadd.f32 %v603, 0.0
        %v606 = vrot.slane %v594, 7
        %v607 = vrot.slane %v595, 7
        %vm608 = vcmp.lt.s32.totalorder %v271, 1
        %v609 = vsel %vm608, %v606, %v607
        %v610 = vsel %vm608, %v607, %v606
        %v611 = vrot.slane %v594, 1
        %v612 = vrot.slane %v595, 1
        %vm613 = vcmp.lt.s32.totalorder %v271, 7
        %v614 = vsel %vm613, %v611, %v612
        %v615 = vsel %vm613, %v612, %v611
        %v616 = vadd.f32 %v610, %v594
        %v617 = vadd.f32 %v609, %v595
        %v618 = vadd.f32 %v616, %v614
        %v619 = vadd.f32 %v617, %v615
        %v620 = vsub.f32 %v614, %v610
        %v621 = vsub.f32 %v615, %v609
        %v622 = vmul.f32 %v620, %v287
        %v623 = vmul.f32 %v621, %v288
        %v624 = vadd.f32 %v618, %v622
        %v625 = vadd.f32 %v619, %v623
        %626 = vrot.lane.b32.xlu0 %v624, 1
        %v627 = vpop.permute.xlu0 %626
        %628 = vrot.lane.b32.xlu0 %v625, 1
        %v629 = vpop.permute.xlu0 %628
        %630 = vrot.lane.b32.xlu0 %v624, 127
        %v631 = vpop.permute.xlu0 %630
        %632 = vrot.lane.b32.xlu0 %v625, 127
        %v633 = vpop.permute.xlu0 %632
        %v634 = vadd.f32 %v627, %v624
        %v635 = vadd.f32 %v629, %v625
        %v636 = vadd.f32 %v634, %v631
        %v637 = vadd.f32 %v635, %v633
        %v638 = vsub.f32 %v631, %v627
        %v639 = vsub.f32 %v633, %v629
        %v640 = vmul.f32 %v638, %v295
        %v641 = vmul.f32 %v639, %v295
        %v642 = vadd.f32 %v636, %v640
        %v643 = vadd.f32 %v637, %v641
        %v644 = vmul.f32 %v642, %v642
        %v645 = vmul.f32 %v643, %v643
        %v646 = vld [vmem:[#allocation3] sm:$0xff]
        %v647 = vld [vmem:[#allocation3 + $0x8] sm:$0xff]
        %v648 = vmul.f32 %v642, %v646
        %v649 = vmul.f32 %v643, %v647
        %v650 = vmul.f32 %v594, %v594
        %v651 = vmul.f32 %v595, %v595
        %v652 = vrot.slane %v650, 7
        %v653 = vrot.slane %v651, 7
        %v654 = vsel %vm608, %v652, %v653
        %v655 = vsel %vm608, %v653, %v652
        %v656 = vrot.slane %v650, 1
        %v657 = vrot.slane %v651, 1
        %v658 = vsel %vm613, %v656, %v657
        %v659 = vsel %vm613, %v657, %v656
        %v660 = vadd.f32 %v655, %v650
        %v661 = vadd.f32 %v654, %v651
        %v662 = vadd.f32 %v660, %v658
        %v663 = vadd.f32 %v661, %v659
        %v664 = vsub.f32 %v658, %v655
        %v665 = vsub.f32 %v659, %v654
        %v666 = vmul.f32 %v664, %v287
        %v667 = vmul.f32 %v665, %v288
        %v668 = vadd.f32 %v662, %v666
        %v669 = vadd.f32 %v663, %v667
        %670 = vrot.lane.b32.xlu0 %v668, 1
        %v671 = vpop.permute.xlu0 %670
        %672 = vrot.lane.b32.xlu0 %v669, 1
        %v673 = vpop.permute.xlu0 %672
        %674 = vrot.lane.b32.xlu0 %v668, 127
        %v675 = vpop.permute.xlu0 %674
        %676 = vrot.lane.b32.xlu0 %v669, 127
        %v677 = vpop.permute.xlu0 %676
        %v678 = vadd.f32 %v671, %v668
        %v679 = vadd.f32 %v673, %v669
        %v680 = vadd.f32 %v678, %v675
        %v681 = vadd.f32 %v679, %v677
        %v682 = vsub.f32 %v675, %v671
        %v683 = vsub.f32 %v677, %v673
        %v684 = vmul.f32 %v682, %v295
        %v685 = vmul.f32 %v683, %v295
        %v686 = vadd.f32 %v680, %v684
        %v687 = vadd.f32 %v681, %v685
        %v688 = vmul.f32 %v686, 9.0
        %v689 = vmul.f32 %v687, 9.0
        %v690 = vsub.f32 %v688, %v644
        %v691 = vsub.f32 %v689, %v645
        %v692 = vmul.f32 %v594, %v598
        %v693 = vmul.f32 %v595, %v599
        %v694 = vrot.slane %v692, 7
        %v695 = vrot.slane %v693, 7
        %v696 = vsel %vm608, %v694, %v695
        %v697 = vsel %vm608, %v695, %v694
        %v698 = vrot.slane %v692, 1
        %v699 = vrot.slane %v693, 1
        %v700 = vsel %vm613, %v698, %v699
        %v701 = vsel %vm613, %v699, %v698
        %v702 = vadd.f32 %v697, %v692
        %v703 = vadd.f32 %v696, %v693
        %v704 = vadd.f32 %v702, %v700
        %v705 = vadd.f32 %v703, %v701
        %v706 = vsub.f32 %v700, %v697
        %v707 = vsub.f32 %v701, %v696
        %v708 = vmul.f32 %v706, %v287
        %v709 = vmul.f32 %v707, %v288
        %v710 = vadd.f32 %v704, %v708
        %v711 = vadd.f32 %v705, %v709
        %712 = vrot.lane.b32.xlu0 %v710, 1
        %v713 = vpop.permute.xlu0 %712
        %714 = vrot.lane.b32.xlu0 %v711, 1
        %v715 = vpop.permute.xlu0 %714
        %716 = vrot.lane.b32.xlu0 %v710, 127
        %v717 = vpop.permute.xlu0 %716
        %718 = vrot.lane.b32.xlu0 %v711, 127
        %v719 = vpop.permute.xlu0 %718
        %v720 = vadd.f32 %v713, %v710
        %v721 = vadd.f32 %v715, %v711
        %v722 = vadd.f32 %v720, %v717
        %v723 = vadd.f32 %v721, %v719
        %v724 = vsub.f32 %v717, %v713
        %v725 = vsub.f32 %v719, %v715
        %v726 = vmul.f32 %v724, %v295
        %v727 = vmul.f32 %v725, %v295
        %v728 = vadd.f32 %v722, %v726
        %v729 = vadd.f32 %v723, %v727
        %v730 = vmul.f32 %v728, 9.0
        %v731 = vmul.f32 %v729, 9.0
        %v732 = vsub.f32 %v730, %v648
        %v733 = vsub.f32 %v731, %v649
        %v734 = vmul.f32 %v732, 2.0
        %v735 = vmul.f32 %v733, 2.0
        %v736 = vadd.f32 %v734, 0.0729
        %v737 = vadd.f32 %v735, 0.0729
        %v738 = vld [vmem:[#allocation5] sm:$0xff]
        %v739 = vld [vmem:[#allocation5 + $0x8] sm:$0xff]
        %v740 = vadd.f32 %v690, %v738
        %v741 = vadd.f32 %v691, %v739
        %v742 = vmul.f32 %v648, 2.0
        %v743 = vmul.f32 %v649, 2.0
        %v744 = vadd.f32 %v742, 0.0081
        %v745 = vadd.f32 %v743, 0.0081
        %v746 = vmul.f32 %v744, %v736
        %v747 = vmul.f32 %v745, %v737
        %v748 = vld [vmem:[#allocation4] sm:$0xff]
        %v749 = vld [vmem:[#allocation4 + $0x8] sm:$0xff]
        %v750 = vadd.f32 %v644, %v748
        %v751 = vadd.f32 %v645, %v749
        %v752 = vmul.f32 %v750, %v740
        %v753 = vmul.f32 %v751, %v741
        %v754 = vrcp.pop %v752
        %v755 = vrcp.pop %v753
        %v756 = vmul.f32 %v746, %v754
        %v757 = vmul.f32 %v747, %v755
        %v758 = vsub.f32 1.0, %v756
        %v759 = vsub.f32 1.0, %v757
        %v760 = vmul.f32 %v758, 0.5
        %v761 = vmul.f32 %v759, 0.5
        %v762 = vmax.f32 %v760, 0.0
        %v763 = vmax.f32 %v761, 0.0
        %v764 = vmin.f32 %v762, 1.0
        %v765 = vmin.f32 %v763, 1.0
        %v766 = vadd.f32 %v764, 0.0
        %v767 = vadd.f32 %v765, 0.0
        %s768 = scalar_lea.vmem %s234, 8 [#allocation6]
        %v769 = vld [vmem:[%s768] sm:$0xf]
        %v770 = vld [vmem:[%s768 + $0x4] sm:$0xf]
        %v771 = vunpack.c.l.bf16 %v769
        %v772 = vunpack.c.l.bf16 %v770
        %s773 = scalar_lea.vmem %s243, 8 [#allocation9]
        %v774 = vld [vmem:[%s773] sm:$0xf]
        %v775 = vld [vmem:[%s773 + $0x4] sm:$0xf]
        %v776 = vunpack.c.l.bf16 %v774
        %v777 = vunpack.c.l.bf16 %v775
        %v778 = vsub.f32 %v771, %v776
        %v779 = vsub.f32 %v772, %v777
        %v780 = vand.u32 2147483647, %v778
        %v781 = vand.u32 2147483647, %v779
        %v782 = vadd.f32 %v604, %v780
        %v783 = vadd.f32 %v605, %v781
        %v784 = vrot.slane %v771, 7
        %v785 = vrot.slane %v772, 7
        %v786 = vsel %vm608, %v784, %v785
        %v787 = vsel %vm608, %v785, %v784
        %v788 = vrot.slane %v771, 1
        %v789 = vrot.slane %v772, 1
        %v790 = vsel %vm613, %v788, %v789
        %v791 = vsel %vm613, %v789, %v788
        %v792 = vadd.f32 %v787, %v771
        %v793 = vadd.f32 %v786, %v772
        %v794 = vadd.f32 %v792, %v790
        %v795 = vadd.f32 %v793, %v791
        %v796 = vsub.f32 %v790, %v787
        %v797 = vsub.f32 %v791, %v786
        %v798 = vmul.f32 %v796, %v287
        %v799 = vmul.f32 %v797, %v288
        %v800 = vadd.f32 %v794, %v798
        %v801 = vadd.f32 %v795, %v799
        %802 = vrot.lane.b32.xlu0 %v800, 1
        %v803 = vpop.permute.xlu0 %802
        %804 = vrot.lane.b32.xlu0 %v801, 1
        %v805 = vpop.permute.xlu0 %804
        %806 = vrot.lane.b32.xlu0 %v800, 127
        %v807 = vpop.permute.xlu0 %806
        %808 = vrot.lane.b32.xlu0 %v801, 127
        %v809 = vpop.permute.xlu0 %808
        %v810 = vadd.f32 %v803, %v800
        %v811 = vadd.f32 %v805, %v801
        %v812 = vadd.f32 %v810, %v807
        %v813 = vadd.f32 %v811, %v809
        %v814 = vsub.f32 %v807, %v803
        %v815 = vsub.f32 %v809, %v805
        %v816 = vmul.f32 %v814, %v295
        %v817 = vmul.f32 %v815, %v295
        %v818 = vadd.f32 %v812, %v816
        %v819 = vadd.f32 %v813, %v817
        %v820 = vmul.f32 %v818, %v818
        %v821 = vmul.f32 %v819, %v819
        %s822 = scalar_lea.vmem [#allocation3], 16
        %v823 = vld [vmem:[%s822] sm:$0xff]
        %v824 = vld [vmem:[%s822 + $0x8] sm:$0xff]
        %v825 = vmul.f32 %v818, %v823
        %v826 = vmul.f32 %v819, %v824
        %v827 = vmul.f32 %v771, %v771
        %v828 = vmul.f32 %v772, %v772
        %v829 = vrot.slane %v827, 7
        %v830 = vrot.slane %v828, 7
        %v831 = vsel %vm608, %v829, %v830
        %v832 = vsel %vm608, %v830, %v829
        %v833 = vrot.slane %v827, 1
        %v834 = vrot.slane %v828, 1
        %v835 = vsel %vm613, %v833, %v834
        %v836 = vsel %vm613, %v834, %v833
        %v837 = vadd.f32 %v832, %v827
        %v838 = vadd.f32 %v831, %v828
        %v839 = vadd.f32 %v837, %v835
        %v840 = vadd.f32 %v838, %v836
        %v841 = vsub.f32 %v835, %v832
        %v842 = vsub.f32 %v836, %v831
        %v843 = vmul.f32 %v841, %v287
        %v844 = vmul.f32 %v842, %v288
        %v845 = vadd.f32 %v839, %v843
        %v846 = vadd.f32 %v840, %v844
        %847 = vrot.lane.b32.xlu0 %v845, 1
        %v848 = vpop.permute.xlu0 %847
        %849 = vrot.lane.b32.xlu0 %v846, 1
        %v850 = vpop.permute.xlu0 %849
        %851 = vrot.lane.b32.xlu0 %v845, 127
        %v852 = vpop.permute.xlu0 %851
        %853 = vrot.lane.b32.xlu0 %v846, 127
        %v854 = vpop.permute.xlu0 %853
        %v855 = vadd.f32 %v848, %v845
        %v856 = vadd.f32 %v850, %v846
        %v857 = vadd.f32 %v855, %v852
        %v858 = vadd.f32 %v856, %v854
        %v859 = vsub.f32 %v852, %v848
        %v860 = vsub.f32 %v854, %v850
        %v861 = vmul.f32 %v859, %v295
        %v862 = vmul.f32 %v860, %v295
        %v863 = vadd.f32 %v857, %v861
        %v864 = vadd.f32 %v858, %v862
        %v865 = vmul.f32 %v863, 9.0
        %v866 = vmul.f32 %v864, 9.0
        %v867 = vsub.f32 %v865, %v820
        %v868 = vsub.f32 %v866, %v821
        %v869 = vmul.f32 %v771, %v776
        %v870 = vmul.f32 %v772, %v777
        %v871 = vrot.slane %v869, 7
        %v872 = vrot.slane %v870, 7
        %v873 = vsel %vm608, %v871, %v872
        %v874 = vsel %vm608, %v872, %v871
        %v875 = vrot.slane %v869, 1
        %v876 = vrot.slane %v870, 1
        %v877 = vsel %vm613, %v875, %v876
        %v878 = vsel %vm613, %v876, %v875
        %v879 = vadd.f32 %v874, %v869
        %v880 = vadd.f32 %v873, %v870
        %v881 = vadd.f32 %v879, %v877
        %v882 = vadd.f32 %v880, %v878
        %v883 = vsub.f32 %v877, %v874
        %v884 = vsub.f32 %v878, %v873
        %v885 = vmul.f32 %v883, %v287
        %v886 = vmul.f32 %v884, %v288
        %v887 = vadd.f32 %v881, %v885
        %v888 = vadd.f32 %v882, %v886
        %889 = vrot.lane.b32.xlu0 %v887, 1
        %v890 = vpop.permute.xlu0 %889
        %891 = vrot.lane.b32.xlu0 %v888, 1
        %v892 = vpop.permute.xlu0 %891
        %893 = vrot.lane.b32.xlu0 %v887, 127
        %v894 = vpop.permute.xlu0 %893
        %895 = vrot.lane.b32.xlu0 %v888, 127
        %v896 = vpop.permute.xlu0 %895
        %v897 = vadd.f32 %v890, %v887
        %v898 = vadd.f32 %v892, %v888
        %v899 = vadd.f32 %v897, %v894
        %v900 = vadd.f32 %v898, %v896
        %v901 = vsub.f32 %v894, %v890
        %v902 = vsub.f32 %v896, %v892
        %v903 = vmul.f32 %v901, %v295
        %v904 = vmul.f32 %v902, %v295
        %v905 = vadd.f32 %v899, %v903
        %v906 = vadd.f32 %v900, %v904
        %v907 = vmul.f32 %v905, 9.0
        %v908 = vmul.f32 %v906, 9.0
        %v909 = vsub.f32 %v907, %v825
        %v910 = vsub.f32 %v908, %v826
        %v911 = vmul.f32 %v909, 2.0
        %v912 = vmul.f32 %v910, 2.0
        %v913 = vadd.f32 %v911, 0.0729
        %v914 = vadd.f32 %v912, 0.0729
        %s915 = scalar_lea.vmem [#allocation5], 16
        %v916 = vld [vmem:[%s915] sm:$0xff]
        %v917 = vld [vmem:[%s915 + $0x8] sm:$0xff]
        %v918 = vadd.f32 %v867, %v916
        %v919 = vadd.f32 %v868, %v917
        %v920 = vmul.f32 %v825, 2.0
        %v921 = vmul.f32 %v826, 2.0
        %v922 = vadd.f32 %v920, 0.0081
        %v923 = vadd.f32 %v921, 0.0081
        %v924 = vmul.f32 %v922, %v913
        %v925 = vmul.f32 %v923, %v914
        %s926 = scalar_lea.vmem [#allocation4], 16
        %v927 = vld [vmem:[%s926] sm:$0xff]
        %v928 = vld [vmem:[%s926 + $0x8] sm:$0xff]
        %v929 = vadd.f32 %v820, %v927
        %v930 = vadd.f32 %v821, %v928
        %v931 = vmul.f32 %v929, %v918
        %v932 = vmul.f32 %v930, %v919
        %v933 = vrcp.pop %v931
        %v934 = vrcp.pop %v932
        %v935 = vmul.f32 %v924, %v933
        %v936 = vmul.f32 %v925, %v934
        %v937 = vsub.f32 1.0, %v935
        %v938 = vsub.f32 1.0, %v936
        %v939 = vmul.f32 %v937, 0.5
        %v940 = vmul.f32 %v938, 0.5
        %v941 = vmax.f32 %v939, 0.0
        %v942 = vmax.f32 %v940, 0.0
        %v943 = vmin.f32 %v941, 1.0
        %v944 = vmin.f32 %v942, 1.0
        %v945 = vadd.f32 %v766, %v943
        %v946 = vadd.f32 %v767, %v944
        %s947 = scalar_lea.vmem %s234, 16 [#allocation6]
        %v948 = vld [vmem:[%s947] sm:$0xf]
        %v949 = vld [vmem:[%s947 + $0x4] sm:$0xf]
        %v950 = vunpack.c.l.bf16 %v948
        %v951 = vunpack.c.l.bf16 %v949
        %s952 = scalar_lea.vmem %s243, 16 [#allocation9]
        %v953 = vld [vmem:[%s952] sm:$0xf]
        %v954 = vld [vmem:[%s952 + $0x4] sm:$0xf]
        %v955 = vunpack.c.l.bf16 %v953
        %v956 = vunpack.c.l.bf16 %v954
        %v957 = vsub.f32 %v950, %v955
        %v958 = vsub.f32 %v951, %v956
        %v959 = vand.u32 2147483647, %v957
        %v960 = vand.u32 2147483647, %v958
        %v961 = vadd.f32 %v782, %v959
        %v962 = vadd.f32 %v783, %v960
        %v963 = vrot.slane %v950, 7
        %v964 = vrot.slane %v951, 7
        %v965 = vsel %vm608, %v963, %v964
        %v966 = vsel %vm608, %v964, %v963
        %v967 = vrot.slane %v950, 1
        %v968 = vrot.slane %v951, 1
        %v969 = vsel %vm613, %v967, %v968
        %v970 = vsel %vm613, %v968, %v967
        %v971 = vadd.f32 %v966, %v950
        %v972 = vadd.f32 %v965, %v951
        %v973 = vadd.f32 %v971, %v969
        %v974 = vadd.f32 %v972, %v970
        %v975 = vsub.f32 %v969, %v966
        %v976 = vsub.f32 %v970, %v965
        %v977 = vmul.f32 %v975, %v287
        %v978 = vmul.f32 %v976, %v288
        %v979 = vadd.f32 %v973, %v977
        %v980 = vadd.f32 %v974, %v978
        %981 = vrot.lane.b32.xlu0 %v979, 1
        %v982 = vpop.permute.xlu0 %981
        %983 = vrot.lane.b32.xlu0 %v980, 1
        %v984 = vpop.permute.xlu0 %983
        %985 = vrot.lane.b32.xlu0 %v979, 127
        %v986 = vpop.permute.xlu0 %985
        %987 = vrot.lane.b32.xlu0 %v980, 127
        %v988 = vpop.permute.xlu0 %987
        %v989 = vadd.f32 %v982, %v979
        %v990 = vadd.f32 %v984, %v980
        %v991 = vadd.f32 %v989, %v986
        %v992 = vadd.f32 %v990, %v988
        %v993 = vsub.f32 %v986, %v982
        %v994 = vsub.f32 %v988, %v984
        %v995 = vmul.f32 %v993, %v295
        %v996 = vmul.f32 %v994, %v295
        %v997 = vadd.f32 %v991, %v995
        %v998 = vadd.f32 %v992, %v996
        %v999 = vmul.f32 %v997, %v997
        %v1000 = vmul.f32 %v998, %v998
        %s1001 = scalar_lea.vmem [#allocation3], 32
        %v1002 = vld [vmem:[%s1001] sm:$0xff]
        %v1003 = vld [vmem:[%s1001 + $0x8] sm:$0xff]
        %v1004 = vmul.f32 %v997, %v1002
        %v1005 = vmul.f32 %v998, %v1003
        %v1006 = vmul.f32 %v950, %v950
        %v1007 = vmul.f32 %v951, %v951
        %v1008 = vrot.slane %v1006, 7
        %v1009 = vrot.slane %v1007, 7
        %v1010 = vsel %vm608, %v1008, %v1009
        %v1011 = vsel %vm608, %v1009, %v1008
        %v1012 = vrot.slane %v1006, 1
        %v1013 = vrot.slane %v1007, 1
        %v1014 = vsel %vm613, %v1012, %v1013
        %v1015 = vsel %vm613, %v1013, %v1012
        %v1016 = vadd.f32 %v1011, %v1006
        %v1017 = vadd.f32 %v1010, %v1007
        %v1018 = vadd.f32 %v1016, %v1014
        %v1019 = vadd.f32 %v1017, %v1015
        %v1020 = vsub.f32 %v1014, %v1011
        %v1021 = vsub.f32 %v1015, %v1010
        %v1022 = vmul.f32 %v1020, %v287
        %v1023 = vmul.f32 %v1021, %v288
        %v1024 = vadd.f32 %v1018, %v1022
        %v1025 = vadd.f32 %v1019, %v1023
        %1026 = vrot.lane.b32.xlu0 %v1024, 1
        %v1027 = vpop.permute.xlu0 %1026
        %1028 = vrot.lane.b32.xlu0 %v1025, 1
        %v1029 = vpop.permute.xlu0 %1028
        %1030 = vrot.lane.b32.xlu0 %v1024, 127
        %v1031 = vpop.permute.xlu0 %1030
        %1032 = vrot.lane.b32.xlu0 %v1025, 127
        %v1033 = vpop.permute.xlu0 %1032
        %v1034 = vadd.f32 %v1027, %v1024
        %v1035 = vadd.f32 %v1029, %v1025
        %v1036 = vadd.f32 %v1034, %v1031
        %v1037 = vadd.f32 %v1035, %v1033
        %v1038 = vsub.f32 %v1031, %v1027
        %v1039 = vsub.f32 %v1033, %v1029
        %v1040 = vmul.f32 %v1038, %v295
        %v1041 = vmul.f32 %v1039, %v295
        %v1042 = vadd.f32 %v1036, %v1040
        %v1043 = vadd.f32 %v1037, %v1041
        %v1044 = vmul.f32 %v1042, 9.0
        %v1045 = vmul.f32 %v1043, 9.0
        %v1046 = vsub.f32 %v1044, %v999
        %v1047 = vsub.f32 %v1045, %v1000
        %v1048 = vmul.f32 %v950, %v955
        %v1049 = vmul.f32 %v951, %v956
        %v1050 = vrot.slane %v1048, 7
        %v1051 = vrot.slane %v1049, 7
        %v1052 = vsel %vm608, %v1050, %v1051
        %v1053 = vsel %vm608, %v1051, %v1050
        %v1054 = vrot.slane %v1048, 1
        %v1055 = vrot.slane %v1049, 1
        %v1056 = vsel %vm613, %v1054, %v1055
        %v1057 = vsel %vm613, %v1055, %v1054
        %v1058 = vadd.f32 %v1053, %v1048
        %v1059 = vadd.f32 %v1052, %v1049
        %v1060 = vadd.f32 %v1058, %v1056
        %v1061 = vadd.f32 %v1059, %v1057
        %v1062 = vsub.f32 %v1056, %v1053
        %v1063 = vsub.f32 %v1057, %v1052
        %v1064 = vmul.f32 %v1062, %v287
        %v1065 = vmul.f32 %v1063, %v288
        %v1066 = vadd.f32 %v1060, %v1064
        %v1067 = vadd.f32 %v1061, %v1065
        %1068 = vrot.lane.b32.xlu0 %v1066, 1
        %v1069 = vpop.permute.xlu0 %1068
        %1070 = vrot.lane.b32.xlu0 %v1067, 1
        %v1071 = vpop.permute.xlu0 %1070
        %1072 = vrot.lane.b32.xlu0 %v1066, 127
        %v1073 = vpop.permute.xlu0 %1072
        %1074 = vrot.lane.b32.xlu0 %v1067, 127
        %v1075 = vpop.permute.xlu0 %1074
        %v1076 = vadd.f32 %v1069, %v1066
        %v1077 = vadd.f32 %v1071, %v1067
        %v1078 = vadd.f32 %v1076, %v1073
        %v1079 = vadd.f32 %v1077, %v1075
        %v1080 = vsub.f32 %v1073, %v1069
        %v1081 = vsub.f32 %v1075, %v1071
        %v1082 = vmul.f32 %v1080, %v295
        %v1083 = vmul.f32 %v1081, %v295
        %v1084 = vadd.f32 %v1078, %v1082
        %v1085 = vadd.f32 %v1079, %v1083
        %v1086 = vmul.f32 %v1084, 9.0
        %v1087 = vmul.f32 %v1085, 9.0
        %v1088 = vsub.f32 %v1086, %v1004
        %v1089 = vsub.f32 %v1087, %v1005
        %v1090 = vmul.f32 %v1088, 2.0
        %v1091 = vmul.f32 %v1089, 2.0
        %v1092 = vadd.f32 %v1090, 0.0729
        %v1093 = vadd.f32 %v1091, 0.0729
        %s1094 = scalar_lea.vmem [#allocation5], 32
        %v1095 = vld [vmem:[%s1094] sm:$0xff]
        %v1096 = vld [vmem:[%s1094 + $0x8] sm:$0xff]
        %v1097 = vadd.f32 %v1046, %v1095
        %v1098 = vadd.f32 %v1047, %v1096
        %v1099 = vmul.f32 %v1004, 2.0
        %v1100 = vmul.f32 %v1005, 2.0
        %v1101 = vadd.f32 %v1099, 0.0081
        %v1102 = vadd.f32 %v1100, 0.0081
        %v1103 = vmul.f32 %v1101, %v1092
        %v1104 = vmul.f32 %v1102, %v1093
        %s1105 = scalar_lea.vmem [#allocation4], 32
        %v1106 = vld [vmem:[%s1105] sm:$0xff]
        %v1107 = vld [vmem:[%s1105 + $0x8] sm:$0xff]
        %v1108 = vadd.f32 %v999, %v1106
        %v1109 = vadd.f32 %v1000, %v1107
        %v1110 = vmul.f32 %v1108, %v1097
        %v1111 = vmul.f32 %v1109, %v1098
        %v1112 = vrcp.pop %v1110
        %v1113 = vrcp.pop %v1111
        %v1114 = vmul.f32 %v1103, %v1112
        %v1115 = vmul.f32 %v1104, %v1113
        %v1116 = vsub.f32 1.0, %v1114
        %v1117 = vsub.f32 1.0, %v1115
        %v1118 = vmul.f32 %v1116, 0.5
        %v1119 = vmul.f32 %v1117, 0.5
        %v1120 = vmax.f32 %v1118, 0.0
        %v1121 = vmax.f32 %v1119, 0.0
        %v1122 = vmin.f32 %v1120, 1.0
        %v1123 = vmin.f32 %v1121, 1.0
        %v1124 = vadd.f32 %v945, %v1122
        %v1125 = vadd.f32 %v946, %v1123
        %v1126 = vmul.f32 %v1124, 0.28333333
        %v1127 = vmul.f32 %v1125, 0.28333333
        %v1128 = vmul.f32 %v961, 0.05
        %v1129 = vmul.f32 %v962, 0.05
        %v1130 = vadd.f32 %v1126, %v1128
        %v1131 = vadd.f32 %v1127, %v1129
        // Predicated region
        $region41: #{tpu_custom_call.1} parent=27 // pred_check
          %p1132 = pneg %p296
        $region42: #{tpu_custom_call.1} parent=27 // pred_check_branch
          %1134 = sbr.rel (%p1132) target = $region44
        $region43: #{tpu_custom_call.1} parent=27 // pred_region
          %1135 = vst [vmem:[#allocation2] sm:$0xff] %v1130
          %1136 = vst [vmem:[#allocation2 + $0x8] sm:$0xff] %v1131
        $region44: #{tpu_custom_call.1} parent=27 // pred_fallthru
          _
        %p1137 = scmp.gt.s32.totalorder %s27, 0
        // Predicated region
        $region45: #{tpu_custom_call.1} parent=27 // pred_check
          %p1138 = pneg %p1137
        $region46: #{tpu_custom_call.1} parent=27 // pred_check_branch
          %1140 = sbr.rel (%p1138) target = $region48
        $region47: #{tpu_custom_call.1} parent=27 // pred_region
          %v1141 = vld [vmem:[#allocation2] sm:$0xff]
          %v1142 = vld [vmem:[#allocation2 + $0x8] sm:$0xff]
          %v1143 = vmin.f32 %v1141, %v1130
          %v1144 = vmin.f32 %v1142, %v1131
          %1145 = vst [vmem:[#allocation2] sm:$0xff] %v1143
          %1146 = vst [vmem:[#allocation2 + $0x8] sm:$0xff] %v1144
        $region48: #{tpu_custom_call.1} parent=27 // pred_fallthru
          _
        %p1147 = scmp.eq.s32.totalorder %s27, 3
        // Predicated region
        $region49: #{tpu_custom_call.1} parent=27 // pred_check
          %p1148 = pneg %p1147
        $region50: #{tpu_custom_call.1} parent=27 // pred_check_branch
          %1150 = sbr.rel (%p1148) target = $region52
        $region51: #{tpu_custom_call.1} parent=27 // pred_region
          %v1151 = vld [vmem:[#allocation2] sm:$0xff]
          %v1152 = vld [vmem:[#allocation2 + $0x8] sm:$0xff]
          %v1153 = vadd.f32 %v1151, %v1152
          %1154 = vadd.xlane.f32.xlu0 %v1153
          %v1155 = vpop.xlane.xlu0 %1154
          %v1156 = vrot.slane %v1155, 4
          %v1157 = vadd.f32 %v1155, %v1156
          %v1158 = vrot.slane %v1157, 2
          %v1159 = vadd.f32 %v1157, %v1158
          %v1160 = vrot.slane %v1159, 1
          %v1161 = vadd.f32 %v1159, %v1160
          %s1162 = vtos %v1161
          %v1163 = vstv %s1162
          %1164 = vst [vmem:[%s268] sm:$0xff] %v1163
        $region52: #{tpu_custom_call.1} parent=27 // pred_fallthru
          _
        %s1165 = sand.u32 %s96, 1
        %s1166 = scalar_lea.sflag [#allocation8], %s1165
        %s1167 = sand.u32 %s96, 1
        %s1168 = smul.addr %s1167, 8
        %s1169 = scalar_lea.vmem [#allocation11], %s1168
        // Predicated region
        $region53: #{tpu_custom_call.1} parent=27 // pred_check
          %p1170 = pneg %p106
        $region54: #{tpu_custom_call.1} parent=27 // pred_check_branch
          %1172 = sbr.rel (%p1170) target = $region56
        $region55: #{tpu_custom_call.1} parent=27 // pred_region
          %s1174 = ssub.s32 128, 128
          %1175 = vsyncadd %s1166, %s1174
          %s1176 = smul.addr %s26, 128
          %s1177 = scalar_lea.hbm %s2, %s1176
          %s1179 = sshll.u32 %s1169, 4
          %s1180 = int_to_ptr.vmem [resolvable:$true] %s1179
          %1182 = dma.vmem_to_hbm [thread:$0]  %s1180, 128, %s1177, %s1166
        $region56: #{tpu_custom_call.1} parent=27 // pred_fallthru
          _
      $region28: #{tpu_custom_call.1} parent=5 // pred_fallthru
        _
      %p1183 = scmp.le.s32.totalorder 2, %s17
      // Predicated region
      $region57: #{tpu_custom_call.1} parent=5 // pred_check
        %p1184 = pneg %p1183
      $region58: #{tpu_custom_call.1} parent=5 // pred_check_branch
        %1186 = sbr.rel (%p1184) target = $region60
      $region59: #{tpu_custom_call.1} parent=5 // pred_region
        %s1187 = ssub.s32 %s17, 2
        // Predicated region
        $region61: #{tpu_custom_call.1} parent=59 // pred_check
          %p1188 = pneg %p112
        $region62: #{tpu_custom_call.1} parent=59 // pred_check_branch
          %1190 = sbr.rel (%p1188) target = $region64
        $region63: #{tpu_custom_call.1} parent=59 // pred_region
          %s1191 = sand.u32 %s97, 1
          %s1192 = scalar_lea.sflag [#allocation8], %s1191
          %s1193 = sand.u32 %s97, 1
          %s1194 = smul.addr %s1193, 8
          %s1195 = scalar_lea.vmem [#allocation11], %s1194
          %1196 = dma.done %s1192, 128
        $region64: #{tpu_custom_call.1} parent=59 // pred_fallthru
          _
      $region60: #{tpu_custom_call.1} parent=5 // pred_fallthru
        _
    $region6: #{tpu_custom_call.1} parent=1 // loop_footer
      %s21 = sadd.s32 1, %s17
    $region7: #{tpu_custom_call.1} parent=1 // loop_footer_branch
      %16 = sbr.rel target = $region3
    $region8: #{tpu_custom_call.1} parent=1 // loop_exit
      _
    %1197 = vsyncpa [#allocation7], 1
    %s1198 = scalar_lea.sflag [#allocation7], 1
    %1199 = vsyncpa %s1198, 1
    %1200 = vsyncpa [#allocation10], 1
    %s1201 = scalar_lea.sflag [#allocation10], 1
    %1202 = vsyncpa %s1201, 1
    %1203 = vsyncpa [#allocation8], 1
    %s1204 = scalar_lea.sflag [#allocation8], 1
    %1205 = vsyncpa %s1204, 1

</llo_original>
